<compile_context>
chip_gen: v6e
topology: v6e:2x2x1
jax: 0.10.0
libtpu: 0.0.40
codegen_flags: <defaults>
</compile_context>

<pallas_src>
import functools

import numpy as np
import jax
import jax.numpy as jnp
from jax.experimental import pallas as pl
from jax.experimental.pallas import tpu as pltpu


# ------------------------------- model config -------------------------------

CFG = dict(
    input_size=16,
    input_channels=4,
    cnn_layers=[dict(out_channels=8, kernel=3, stride=2),
                dict(out_channels=16, kernel=3, stride=2)],
    fc_layers=[dict(from_size=144, to_size=32),      # 16ch * 3 * 3 = 144
               dict(from_size=32, to_size=16)],
)


def init_params(key):
    """PyTorch-like layout: conv w (Cout, Cin, K, K); FC w stored as (in, out)
    (i.e. the transpose of nn.Linear.weight)."""
    params = {"conv": [], "fc": []}
    cin = CFG["input_channels"]
    for layer in CFG["cnn_layers"]:
        key, kw_, kb_ = jax.random.split(key, 3)
        k, cout = layer["kernel"], layer["out_channels"]
        w = jax.random.normal(kw_, (cout, cin, k, k), jnp.float32) * 0.05
        b = jax.random.normal(kb_, (cout,), jnp.float32) * 0.05
        params["conv"].append((w, b))
        cin = cout
    for layer in CFG["fc_layers"]:
        key, kw_, kb_ = jax.random.split(key, 3)
        w = jax.random.normal(kw_, (layer["from_size"], layer["to_size"]),
                              jnp.float32) * 0.05
        b = jax.random.normal(kb_, (layer["to_size"],), jnp.float32) * 0.05
        params["fc"].append((w, b))
    key, kw_, kb_ = jax.random.split(key, 3)
    last = CFG["fc_layers"][-1]["to_size"]
    params["to_out"] = (jax.random.normal(kw_, (last, 1), jnp.float32) * 0.05,
                        jax.random.normal(kb_, (1,), jnp.float32) * 0.05)
    return params


# ----------------------- host-side weight preparation ------------------------

def _round_up(n, m):
    return (n + m - 1) // m * m


def conv_to_dense(w, b, h_in, w_in, stride, out_order):
    """Fold a VALID Conv2d into a dense matrix acting on an NHWC-flattened
    image row vector:  conv(img) flattened in `out_order` == img_flat @ M + c.

    w: (Cout, Cin, K, K) PyTorch-layout weight.
    Returns (M (h_in*w_in*Cin, OH*OW*Cout), c (OH*OW*Cout,), OH, OW).
    """
    w = np.asarray(w, np.float32)
    b = np.asarray(b, np.float32)
    cout, cin, k, _ = w.shape
    oh = (h_in - k) // stride + 1
    ow = (w_in - k) // stride + 1
    m = np.zeros((h_in * w_in * cin, oh * ow * cout), np.float32)
    for y in range(oh):
        for x in range(ow):
            pos = y * ow + x
            if out_order == "nhwc":
                cols = pos * cout + np.arange(cout)
            else:                                     # "nchw" (PyTorch flatten)
                cols = np.arange(cout) * (oh * ow) + pos
            for kh in range(k):
                for kw in range(k):
                    r0 = ((y * stride + kh) * w_in + (x * stride + kw)) * cin
                    m[r0:r0 + cin, cols] = w[:, :, kh, kw].T
    c = np.tile(b, oh * ow) if out_order == "nhwc" else np.repeat(b, oh * ow)
    return m, c, oh, ow


def prepare_kernel_params(params):
    """Fold normalization + convs + flatten order into dense kernel operands."""
    (w1, b1), (w2, b2) = params["conv"]
    w1 = np.asarray(w1, np.float32)
    b1 = np.asarray(b1, np.float32)
    w2 = np.asarray(w2, np.float32)
    b2 = np.asarray(b2, np.float32)
    s1 = CFG["cnn_layers"][0]["stride"]
    s2 = CFG["cnn_layers"][1]["stride"]
    hw = CFG["input_size"]

    # Fold the input normalization (x / 127.5 - 1) into conv1:
    #   conv(x/127.5 - 1, W) + b == conv(x, W/127.5) + (b - sum(W)).
    w1_eff = w1 / 127.5
    b1_eff = b1 - w1.sum(axis=(1, 2, 3))

    # conv1 output kept in NHWC order (internal only); conv2 columns emitted in
    # NCHW order so the result directly matches PyTorch's reshape(B, -1)
    # flatten -> no activation transpose and no FC-weight permutation needed.
    m1, c1, oh1, ow1 = conv_to_dense(w1_eff, b1_eff, hw, hw, s1, "nhwc")
    m2, c2, _, _ = conv_to_dense(w2, b2, oh1, ow1, s2, "nchw")

    (fc1_w, fc1_b), (fc2_w, fc2_b) = params["fc"]
    out_w, out_b = params["to_out"]

    # Pack all biases into one lane-aligned buffer (single DMA for the kernel).
    bias_vecs = [c1, c2, np.asarray(fc1_b, np.float32),
                 np.asarray(fc2_b, np.float32), np.asarray(out_b, np.float32)]
    widths = tuple(int(v.shape[0]) for v in bias_vecs)
    offsets, off = [], 0
    for wdt in widths:
        offsets.append(off)
        off += _round_up(wdt, 128)
    packed = np.zeros((1, off), np.float32)
    for o, v in zip(offsets, bias_vecs):
        packed[0, o:o + v.shape[0]] = v

    kp = dict(m1=jnp.asarray(m1), m2=jnp.asarray(m2),
              fc1=jnp.asarray(fc1_w, jnp.float32),
              fc2=jnp.asarray(fc2_w, jnp.float32),
              out=jnp.asarray(out_w, jnp.float32),
              bias=jnp.asarray(packed))
    return kp, tuple(offsets), widths


# ------------------------------- Pallas kernel --------------------------------

def _elu(y):
    # nn.ELU(alpha=1): clamp the dead branch so exp never overflows to inf.
    return jnp.where(y > 0, y, jnp.exp(jnp.minimum(y, 0.0)) - 1.0)


def _pilotnet_fused_kernel(x_ref, m1_ref, m2_ref, fc1_ref, fc2_ref, wout_ref,
                           bias_ref, tgt_ref, pred_ref, loss_ref,
                           *, bias_offsets, bias_widths):
    def bias(i):
        o, n = bias_offsets[i], bias_widths[i]
        return bias_ref[:, o:o + n]                      # (1, n) — broadcasts

    x = x_ref[...]                                                     # (B, 1024)
    h = _elu(jnp.dot(x, m1_ref[...],
                     preferred_element_type=jnp.float32) + bias(0))    # (B, 392)
    h = _elu(jnp.dot(h, m2_ref[...],
                     preferred_element_type=jnp.float32) + bias(1))    # (B, 144)
    # TODO(synk): FeedForward class body not provided; assumed Linear+ELU per layer.
    # TODO(synk): nn.Dropout2d is identity in eval mode; omitted.
    h = _elu(jnp.dot(h, fc1_ref[...],
                     preferred_element_type=jnp.float32) + bias(2))    # (B, 32)
    h = _elu(jnp.dot(h, fc2_ref[...],
                     preferred_element_type=jnp.float32) + bias(3))    # (B, 16)
    p = jnp.dot(h, wout_ref[...],
                preferred_element_type=jnp.float32) + bias(4)          # (B, 1)
    pred_ref[...] = p
    d = tgt_ref[...] - p                                               # nn.MSELoss
    loss_ref[...] = (jnp.sum(d * d) / d.size).reshape(1, 1)


def _full_spec(shape):
    zeros = (0,) * len(shape)
    return pl.BlockSpec(shape, lambda i: zeros)


def pilotnet_forward(kp, x_nhwc, targets, *, bias_offsets, bias_widths):
    b = x_nhwc.shape[0]
    x_flat = x_nhwc.reshape(b, -1)            # NHWC flatten: contiguous, free
    operands = (x_flat, kp["m1"], kp["m2"], kp["fc1"], kp["fc2"], kp["out"],
                kp["bias"], targets)
    kernel = functools.partial(_pilotnet_fused_kernel,
                               bias_offsets=bias_offsets,
                               bias_widths=bias_widths)
    pred, loss = pl.pallas_call(
        kernel,
        out_shape=(jax.ShapeDtypeStruct((b, 1), jnp.float32),
                   jax.ShapeDtypeStruct((1, 1), jnp.float32)),
        grid=(1,),
        in_specs=[_full_spec(op.shape) for op in operands],
        out_specs=(_full_spec((b, 1)), _full_spec((1, 1))),
        compiler_params=pltpu.CompilerParams(
            dimension_semantics=("arbitrary",)),
    )(*operands)
    return pred, loss[0, 0]


# ----------------------- pure-JAX reference (PyTorch math) --------------------

def pilotnet_reference(params, x_nhwc, targets):
    hi = jax.lax.Precision.HIGHEST
    h = jnp.transpose(x_nhwc / 127.5 - 1.0, (0, 3, 1, 2))      # NCHW
    for (w, b), layer in zip(params["conv"], CFG["cnn_layers"]):
        s = layer["stride"]
        h = jax.lax.conv_general_dilated(
            h, w, window_strides=(s, s), padding="VALID",
            dimension_numbers=("NCHW", "OIHW", "NCHW"), precision=hi)
        h = _elu(h + b.reshape(1, -1, 1, 1))
    h = h.reshape(h.shape[0], -1)                              # NCHW flatten
    for w, b in params["fc"]:
        h = _elu(jnp.dot(h, w, precision=hi) + b)
    w, b = params["to_out"]
    pred = jnp.dot(h, w, precision=hi) + b
    loss = jnp.mean((targets - pred) ** 2)
    return pred, loss


# ----------------------------------- main ------------------------------------

if __name__ == "__main__":
    key = jax.random.PRNGKey(0)
    kparam, kx, kt = jax.random.split(key, 3)
    params = init_params(kparam)
    kernel_params, bias_offsets, bias_widths = prepare_kernel_params(params)

    hw, cin = CFG["input_size"], CFG["input_channels"]
    x = jax.random.uniform(kx, (2, hw, hw, cin), jnp.float32, 0.0, 255.0)
    targets = jax.random.normal(kt, (2, 1), jnp.float32)

    fwd = jax.jit(functools.partial(pilotnet_forward,
                                    bias_offsets=bias_offsets,
                                    bias_widths=bias_widths))
    predictions, loss = fwd(kernel_params, x, targets)
    jax.block_until_ready((predictions, loss))

    assert predictions.shape == (2, 1)
    assert loss.shape == ()

    # sanity check against a pure-JAX fp32 implementation of the PyTorch module
    ref_pred, ref_loss = jax.jit(pilotnet_reference)(params, x, targets)
    jax.block_until_ready((ref_pred, ref_loss))
    assert np.allclose(np.asarray(predictions), np.asarray(ref_pred),
                       rtol=1e-1, atol=2e-2)
    assert np.allclose(float(loss), float(ref_loss), rtol=1e-1, atol=2e-2)

    print("KERNEL_OK")
</pallas_src>

<mosaic_0001>
module attributes {stable_mosaic.version = 11 : i64} {
  func.func @_pilotnet_fused_kernel(%arg0: i32, %arg1: memref<2x1024xf32, #tpu.memory_space<vmem>>, %arg2: memref<1024x392xf32, #tpu.memory_space<vmem>>, %arg3: memref<392x144xf32, #tpu.memory_space<vmem>>, %arg4: memref<144x32xf32, #tpu.memory_space<vmem>>, %arg5: memref<32x16xf32, #tpu.memory_space<vmem>>, %arg6: memref<16x1xf32, #tpu.memory_space<vmem>>, %arg7: memref<1x1152xf32, #tpu.memory_space<vmem>>, %arg8: memref<2x1xf32, #tpu.memory_space<vmem>>, %arg9: memref<2x1xf32, #tpu.memory_space<vmem>>, %arg10: memref<1x1xf32, #tpu.memory_space<vmem>>) attributes {dimension_semantics = [#tpu.dimension_semantics<arbitrary>], iteration_bounds = array<i64: 1>, scalar_prefetch = 0 : i64, scratch_operands = 0 : i64, tpu.core_type = #tpu.core_type<tc>, window_params = [{pipeline_mode = #tpu.pipeline_mode<synchronous>, transform_indices = @transform_0, window_bounds = array<i64: 2, 1024>}, {pipeline_mode = #tpu.pipeline_mode<synchronous>, transform_indices = @transform_1, window_bounds = array<i64: 1024, 392>}, {pipeline_mode = #tpu.pipeline_mode<synchronous>, transform_indices = @transform_2, window_bounds = array<i64: 392, 144>}, {pipeline_mode = #tpu.pipeline_mode<synchronous>, transform_indices = @transform_3, window_bounds = array<i64: 144, 32>}, {pipeline_mode = #tpu.pipeline_mode<synchronous>, transform_indices = @transform_4, window_bounds = array<i64: 32, 16>}, {pipeline_mode = #tpu.pipeline_mode<synchronous>, transform_indices = @transform_5, window_bounds = array<i64: 16, 1>}, {pipeline_mode = #tpu.pipeline_mode<synchronous>, transform_indices = @transform_6, window_bounds = array<i64: 1, 1152>}, {pipeline_mode = #tpu.pipeline_mode<synchronous>, transform_indices = @transform_7, window_bounds = array<i64: 2, 1>}, {pipeline_mode = #tpu.pipeline_mode<synchronous>, transform_indices = @transform_8, window_bounds = array<i64: 2, 1>}, {pipeline_mode = #tpu.pipeline_mode<synchronous>, transform_indices = @transform_9, window_bounds = array<i64: 1, 1>}]} {
    %c0 = arith.constant 0 : index
    %c0_0 = arith.constant 0 : index
    %0 = vector.load %arg1[%c0, %c0_0] : memref<2x1024xf32, #tpu.memory_space<vmem>>, vector<2x1024xf32>
    %c0_1 = arith.constant 0 : index
    %c0_2 = arith.constant 0 : index
    %1 = vector.load %arg2[%c0_1, %c0_2] : memref<1024x392xf32, #tpu.memory_space<vmem>>, vector<1024x392xf32>
    %cst = arith.constant dense<0.000000e+00> : vector<2x392xf32>
    %2 = tpu.matmul %0, %1, %cst {dimension_numbers = #tpu.dot_dimension_numbers<[1], [0], [0], [1], [0, 0, 1, 1], [], []>} : vector<2x1024xf32>, vector<1024x392xf32>, vector<2x392xf32> -> vector<2x392xf32>
    %c0_3 = arith.constant 0 : index
    %c0_4 = arith.constant 0 : index
    %3 = vector.load %arg7[%c0_3, %c0_4] : memref<1x1152xf32, #tpu.memory_space<vmem>>, vector<1x392xf32>
    %4 = vector.broadcast %3 : vector<1x392xf32> to vector<2x392xf32>
    %5 = arith.addf %2, %4 : vector<2x392xf32>
    %cst_5 = arith.constant 0.000000e+00 : f32
    %6 = vector.broadcast %cst_5 : f32 to vector<2x392xf32>
    %7 = arith.cmpf ogt, %5, %6 : vector<2x392xf32>
    %cst_6 = arith.constant 0.000000e+00 : f32
    %8 = vector.broadcast %cst_6 : f32 to vector<2x392xf32>
    %9 = arith.minimumf %5, %8 : vector<2x392xf32>
    %10 = math.exp %9 : vector<2x392xf32>
    %cst_7 = arith.constant 1.000000e+00 : f32
    %11 = vector.broadcast %cst_7 : f32 to vector<2x392xf32>
    %12 = arith.subf %10, %11 : vector<2x392xf32>
    %13 = arith.select %7, %5, %12 : vector<2x392xi1>, vector<2x392xf32>
    %c0_8 = arith.constant 0 : index
    %c0_9 = arith.constant 0 : index
    %14 = vector.load %arg3[%c0_8, %c0_9] : memref<392x144xf32, #tpu.memory_space<vmem>>, vector<392x144xf32>
    %cst_10 = arith.constant dense<0.000000e+00> : vector<2x144xf32>
    %15 = tpu.matmul %13, %14, %cst_10 {dimension_numbers = #tpu.dot_dimension_numbers<[1], [0], [0], [1], [0, 0, 1, 1], [], []>} : vector<2x392xf32>, vector<392x144xf32>, vector<2x144xf32> -> vector<2x144xf32>
    %c0_11 = arith.constant 0 : index
    %c512 = arith.constant 512 : index
    %16 = vector.load %arg7[%c0_11, %c512] : memref<1x1152xf32, #tpu.memory_space<vmem>>, vector<1x144xf32>
    %17 = vector.broadcast %16 : vector<1x144xf32> to vector<2x144xf32>
    %18 = arith.addf %15, %17 : vector<2x144xf32>
    %cst_12 = arith.constant 0.000000e+00 : f32
    %19 = vector.broadcast %cst_12 : f32 to vector<2x144xf32>
    %20 = arith.cmpf ogt, %18, %19 : vector<2x144xf32>
    %cst_13 = arith.constant 0.000000e+00 : f32
    %21 = vector.broadcast %cst_13 : f32 to vector<2x144xf32>
    %22 = arith.minimumf %18, %21 : vector<2x144xf32>
    %23 = math.exp %22 : vector<2x144xf32>
    %cst_14 = arith.constant 1.000000e+00 : f32
    %24 = vector.broadcast %cst_14 : f32 to vector<2x144xf32>
    %25 = arith.subf %23, %24 : vector<2x144xf32>
    %26 = arith.select %20, %18, %25 : vector<2x144xi1>, vector<2x144xf32>
    %c0_15 = arith.constant 0 : index
    %c0_16 = arith.constant 0 : index
    %27 = vector.load %arg4[%c0_15, %c0_16] : memref<144x32xf32, #tpu.memory_space<vmem>>, vector<144x32xf32>
    %cst_17 = arith.constant dense<0.000000e+00> : vector<2x32xf32>
    %28 = tpu.matmul %26, %27, %cst_17 {dimension_numbers = #tpu.dot_dimension_numbers<[1], [0], [0], [1], [0, 0, 1, 1], [], []>} : vector<2x144xf32>, vector<144x32xf32>, vector<2x32xf32> -> vector<2x32xf32>
    %c0_18 = arith.constant 0 : index
    %c768 = arith.constant 768 : index
    %29 = vector.load %arg7[%c0_18, %c768] : memref<1x1152xf32, #tpu.memory_space<vmem>>, vector<1x32xf32>
    %30 = vector.broadcast %29 : vector<1x32xf32> to vector<2x32xf32>
    %31 = arith.addf %28, %30 : vector<2x32xf32>
    %cst_19 = arith.constant 0.000000e+00 : f32
    %32 = vector.broadcast %cst_19 : f32 to vector<2x32xf32>
    %33 = arith.cmpf ogt, %31, %32 : vector<2x32xf32>
    %cst_20 = arith.constant 0.000000e+00 : f32
    %34 = vector.broadcast %cst_20 : f32 to vector<2x32xf32>
    %35 = arith.minimumf %31, %34 : vector<2x32xf32>
    %36 = math.exp %35 : vector<2x32xf32>
    %cst_21 = arith.constant 1.000000e+00 : f32
    %37 = vector.broadcast %cst_21 : f32 to vector<2x32xf32>
    %38 = arith.subf %36, %37 : vector<2x32xf32>
    %39 = arith.select %33, %31, %38 : vector<2x32xi1>, vector<2x32xf32>
    %c0_22 = arith.constant 0 : index
    %c0_23 = arith.constant 0 : index
    %40 = vector.load %arg5[%c0_22, %c0_23] : memref<32x16xf32, #tpu.memory_space<vmem>>, vector<32x16xf32>
    %cst_24 = arith.constant dense<0.000000e+00> : vector<2x16xf32>
    %41 = tpu.matmul %39, %40, %cst_24 {dimension_numbers = #tpu.dot_dimension_numbers<[1], [0], [0], [1], [0, 0, 1, 1], [], []>} : vector<2x32xf32>, vector<32x16xf32>, vector<2x16xf32> -> vector<2x16xf32>
    %c0_25 = arith.constant 0 : index
    %c896 = arith.constant 896 : index
    %42 = vector.load %arg7[%c0_25, %c896] : memref<1x1152xf32, #tpu.memory_space<vmem>>, vector<1x16xf32>
    %43 = vector.broadcast %42 : vector<1x16xf32> to vector<2x16xf32>
    %44 = arith.addf %41, %43 : vector<2x16xf32>
    %cst_26 = arith.constant 0.000000e+00 : f32
    %45 = vector.broadcast %cst_26 : f32 to vector<2x16xf32>
    %46 = arith.cmpf ogt, %44, %45 : vector<2x16xf32>
    %cst_27 = arith.constant 0.000000e+00 : f32
    %47 = vector.broadcast %cst_27 : f32 to vector<2x16xf32>
    %48 = arith.minimumf %44, %47 : vector<2x16xf32>
    %49 = math.exp %48 : vector<2x16xf32>
    %cst_28 = arith.constant 1.000000e+00 : f32
    %50 = vector.broadcast %cst_28 : f32 to vector<2x16xf32>
    %51 = arith.subf %49, %50 : vector<2x16xf32>
    %52 = arith.select %46, %44, %51 : vector<2x16xi1>, vector<2x16xf32>
    %c0_29 = arith.constant 0 : index
    %c0_30 = arith.constant 0 : index
    %53 = vector.load %arg6[%c0_29, %c0_30] : memref<16x1xf32, #tpu.memory_space<vmem>>, vector<16x1xf32>
    %cst_31 = arith.constant dense<0.000000e+00> : vector<2x1xf32>
    %54 = tpu.matmul %52, %53, %cst_31 {dimension_numbers = #tpu.dot_dimension_numbers<[1], [0], [0], [1], [0, 0, 1, 1], [], []>} : vector<2x16xf32>, vector<16x1xf32>, vector<2x1xf32> -> vector<2x1xf32>
    %c0_32 = arith.constant 0 : index
    %c1024 = arith.constant 1024 : index
    %55 = vector.load %arg7[%c0_32, %c1024] : memref<1x1152xf32, #tpu.memory_space<vmem>>, vector<1x1xf32>
    %56 = vector.broadcast %55 : vector<1x1xf32> to vector<2x1xf32>
    %57 = arith.addf %54, %56 : vector<2x1xf32>
    %c0_33 = arith.constant 0 : index
    %c0_34 = arith.constant 0 : index
    %58 = vector.load %arg9[%c0_33, %c0_34] : memref<2x1xf32, #tpu.memory_space<vmem>>, vector<2x1xf32>
    tpu.vector_store %arg9[%c0_33, %c0_34], %57 {strides = array<i32>} : memref<2x1xf32, #tpu.memory_space<vmem>>, vector<2x1xf32>,
    %c0_35 = arith.constant 0 : index
    %c0_36 = arith.constant 0 : index
    %59 = vector.load %arg8[%c0_35, %c0_36] : memref<2x1xf32, #tpu.memory_space<vmem>>, vector<2x1xf32>
    %60 = arith.subf %59, %57 : vector<2x1xf32>
    %61 = arith.mulf %60, %60 : vector<2x1xf32>
    %62 = vector.shape_cast %61 : vector<2x1xf32> to vector<1x2x1xf32>
    %cst_37 = arith.constant dense<0.000000e+00> : vector<1xf32>
    %63 = vector.multi_reduction <add>, %62, %cst_37 [1, 2] : vector<1x2x1xf32> to vector<1xf32>
    %64 = vector.shape_cast %63 : vector<1xf32> to vector<1x1x1xf32>
    %65 = vector.extract %64[0, 0, 0] : f32 from vector<1x1x1xf32>
    %cst_38 = arith.constant 2.000000e+00 : f32
    %66 = arith.divf %65, %cst_38 : f32
    %67 = vector.broadcast %66 : f32 to vector<1x1xf32>
    %c0_39 = arith.constant 0 : index
    %c0_40 = arith.constant 0 : index
    %68 = vector.load %arg10[%c0_39, %c0_40] : memref<1x1xf32, #tpu.memory_space<vmem>>, vector<1x1xf32>
    tpu.vector_store %arg10[%c0_39, %c0_40], %67 {strides = array<i32>} : memref<1x1xf32, #tpu.memory_space<vmem>>, vector<1x1xf32>,
    return
  }
  func.func @transform_0(%arg0: i32) -> (i32, i32) {
    %c0_i32 = arith.constant 0 : i32
    %c0_i32_0 = arith.constant 0 : i32
    %c0_i32_1 = arith.constant 0 : i32
    return %c0_i32, %c0_i32_0 : i32, i32
  }
  func.func @transform_1(%arg0: i32) -> (i32, i32) {
    %c0_i32 = arith.constant 0 : i32
    %c0_i32_0 = arith.constant 0 : i32
    %c0_i32_1 = arith.constant 0 : i32
    return %c0_i32, %c0_i32_0 : i32, i32
  }
  func.func @transform_2(%arg0: i32) -> (i32, i32) {
    %c0_i32 = arith.constant 0 : i32
    %c0_i32_0 = arith.constant 0 : i32
    %c0_i32_1 = arith.constant 0 : i32
    return %c0_i32, %c0_i32_0 : i32, i32
  }
  func.func @transform_3(%arg0: i32) -> (i32, i32) {
    %c0_i32 = arith.constant 0 : i32
    %c0_i32_0 = arith.constant 0 : i32
    %c0_i32_1 = arith.constant 0 : i32
    return %c0_i32, %c0_i32_0 : i32, i32
  }
  func.func @transform_4(%arg0: i32) -> (i32, i32) {
    %c0_i32 = arith.constant 0 : i32
    %c0_i32_0 = arith.constant 0 : i32
    %c0_i32_1 = arith.constant 0 : i32
    return %c0_i32, %c0_i32_0 : i32, i32
  }
  func.func @transform_5(%arg0: i32) -> (i32, i32) {
    %c0_i32 = arith.constant 0 : i32
    %c0_i32_0 = arith.constant 0 : i32
    %c0_i32_1 = arith.constant 0 : i32
    return %c0_i32, %c0_i32_0 : i32, i32
  }
  func.func @transform_6(%arg0: i32) -> (i32, i32) {
    %c0_i32 = arith.constant 0 : i32
    %c0_i32_0 = arith.constant 0 : i32
    %c0_i32_1 = arith.constant 0 : i32
    return %c0_i32, %c0_i32_0 : i32, i32
  }
  func.func @transform_7(%arg0: i32) -> (i32, i32) {
    %c0_i32 = arith.constant 0 : i32
    %c0_i32_0 = arith.constant 0 : i32
    %c0_i32_1 = arith.constant 0 : i32
    return %c0_i32, %c0_i32_0 : i32, i32
  }
  func.func @transform_8(%arg0: i32) -> (i32, i32) {
    %c0_i32 = arith.constant 0 : i32
    %c0_i32_0 = arith.constant 0 : i32
    %c0_i32_1 = arith.constant 0 : i32
    return %c0_i32, %c0_i32_0 : i32, i32
  }
  func.func @transform_9(%arg0: i32) -> (i32, i32) {
    %c0_i32 = arith.constant 0 : i32
    %c0_i32_0 = arith.constant 0 : i32
    %c0_i32_1 = arith.constant 0 : i32
    return %c0_i32, %c0_i32_0 : i32, i32
  }
}

</mosaic_0001>

<llo_original>
// kernel: pilotnet_forward.1
$region0: #{pilotnet_forward.1}
  #allocation0 [shape = 'u32[]', space=smem, size = 0x4, offset = 0x4, fixed_abs, tag = 'smem constant byte address 0x4 - core index']
  #allocation1 [shape = 'u32[144,128]{1,0:T(1,128)}', space=vmem, size = 0x12000, scoped, tag = 'internal scratch']
  %s0 = inlined_call_operand.vmem [shape: f32[2,1024], index: 0, kind: input, shape index: {}]
  %s1 = inlined_call_operand.vmem [shape: f32[1024,392], index: 1, kind: input, shape index: {}]
  %s2 = inlined_call_operand.vmem [shape: f32[392,144], index: 2, kind: input, shape index: {}]
  %s3 = inlined_call_operand.vmem [shape: f32[144,32], index: 3, kind: input, shape index: {}]
  %s4 = inlined_call_operand.vmem [shape: f32[32,16], index: 4, kind: input, shape index: {}]
  %s5 = inlined_call_operand.vmem [shape: f32[16,1], index: 5, kind: input, shape index: {}]
  %s6 = inlined_call_operand.vmem [shape: f32[1,1152], index: 6, kind: input, shape index: {}]
  %s7 = inlined_call_operand.vmem [shape: f32[2,1], index: 7, kind: input, shape index: {}]
  %s8 = inlined_call_operand.vmem [shape: f32[2,1], index: 8, kind: output, shape index: {0}]
  %s9 = inlined_call_operand.hbm [shape: f32[1,1], index: 9, kind: output, shape index: {1}]
  %10 = xla_tuple %s8, %s9
  %s11 = sld [smem:[#allocation0]]
  $region50: #{pilotnet_forward.1} parent=0
    _
  %s13 = ssub.s32 1, %s11
  %s14 = scalar_select 0, %s13, %s11
  $region1: #{pilotnet_forward.1} parent=0
    #allocation2 [shape = 'u8[512]{0}', space=vmem, size = 0x400, scoped, tag = 'output window, operand 1, single buffered']
    #allocation3 [shape = 's32[1]{0}', space=sflag, size = 0x4, scoped, tag = 'scoped memory for pilotnet_forward.1']
    %15 = vsyncpa [#allocation3], 0
    // Predicated region
    $region2: #{pilotnet_forward.1} parent=1 // pred_check
      _
    $region3: #{pilotnet_forward.1} parent=1 // pred_check_branch
      %17 = sbr.rel (0) target = $region5
    $region4: #{pilotnet_forward.1} parent=1 // pred_region
      _
    $region5: #{pilotnet_forward.1} parent=1 // pred_fallthru
      _
    // Predicated region
    $region6: #{pilotnet_forward.1} parent=1 // pred_check
      _
    $region7: #{pilotnet_forward.1} parent=1 // pred_check_branch
      %19 = sbr.rel (0) target = $region9
    $region8: #{pilotnet_forward.1} parent=1 // pred_region
      _
    $region9: #{pilotnet_forward.1} parent=1 // pred_fallthru
      _
    // Predicated region
    $region10: #{pilotnet_forward.1} parent=1 // pred_check
      _
    $region11: #{pilotnet_forward.1} parent=1 // pred_check_branch
      %21 = sbr.rel (0) target = $region13
    $region12: #{pilotnet_forward.1} parent=1 // pred_region
      _
    $region13: #{pilotnet_forward.1} parent=1 // pred_fallthru
      _
    // Predicated region
    $region14: #{pilotnet_forward.1} parent=1 // pred_check
      _
    $region15: #{pilotnet_forward.1} parent=1 // pred_check_branch
      %23 = sbr.rel (0) target = $region17
    $region16: #{pilotnet_forward.1} parent=1 // pred_region
      _
    $region17: #{pilotnet_forward.1} parent=1 // pred_fallthru
      _
    // Predicated region
    $region18: #{pilotnet_forward.1} parent=1 // pred_check
      _
    $region19: #{pilotnet_forward.1} parent=1 // pred_check_branch
      %25 = sbr.rel (0) target = $region21
    $region20: #{pilotnet_forward.1} parent=1 // pred_region
      _
    $region21: #{pilotnet_forward.1} parent=1 // pred_fallthru
      _
    // Predicated region
    $region22: #{pilotnet_forward.1} parent=1 // pred_check
      _
    $region23: #{pilotnet_forward.1} parent=1 // pred_check_branch
      %27 = sbr.rel (0) target = $region25
    $region24: #{pilotnet_forward.1} parent=1 // pred_region
      _
    $region25: #{pilotnet_forward.1} parent=1 // pred_fallthru
      _
    // Predicated region
    $region26: #{pilotnet_forward.1} parent=1 // pred_check
      _
    $region27: #{pilotnet_forward.1} parent=1 // pred_check_branch
      %29 = sbr.rel (0) target = $region29
    $region28: #{pilotnet_forward.1} parent=1 // pred_region
      _
    $region29: #{pilotnet_forward.1} parent=1 // pred_fallthru
      _
    // Predicated region
    $region30: #{pilotnet_forward.1} parent=1 // pred_check
      _
    $region31: #{pilotnet_forward.1} parent=1 // pred_check_branch
      %31 = sbr.rel (0) target = $region33
    $region32: #{pilotnet_forward.1} parent=1 // pred_region
      _
    $region33: #{pilotnet_forward.1} parent=1 // pred_fallthru
      _
    %v32 = vld [vmem:[%s0] sm:$0xff]
    %v33 = vld [vmem:[%s0 + $0x8] sm:$0xff]
    %v34 = vld [vmem:[%s1] sm:$0xff]
    %v35 = vld [vmem:[%s1 + $0x8] sm:$0xff]
    %v36 = vld [vmem:[%s1 + $0x10] sm:$0xff]
    %v37 = vld [vmem:[%s1 + $0x18] sm:$0xff]
    %v38 = vld [vmem:[%s1 + $0x20] sm:$0xff]
    %v39 = vld [vmem:[%s1 + $0x28] sm:$0xff]
    %v40 = vld [vmem:[%s1 + $0x30] sm:$0xff]
    %v41 = vld [vmem:[%s1 + $0x38] sm:$0xff]
    %v42 = vld [vmem:[%s1 + $0x40] sm:$0xff]
    %v43 = vld [vmem:[%s1 + $0x48] sm:$0xff]
    %v44 = vld [vmem:[%s1 + $0x50] sm:$0xff]
    %v45 = vld [vmem:[%s1 + $0x58] sm:$0xff]
    %v46 = vld [vmem:[%s1 + $0x60] sm:$0xff]
    %v47 = vld [vmem:[%s1 + $0x68] sm:$0xff]
    %v48 = vld [vmem:[%s1 + $0x70] sm:$0xff]
    %v49 = vld [vmem:[%s1 + $0x78] sm:$0xff]
    %v50 = vld [vmem:[%s1 + $0x80] sm:$0xff]
    %v51 = vld [vmem:[%s1 + $0x88] sm:$0xff]
    %v52 = vld [vmem:[%s1 + $0x90] sm:$0xff]
    %v53 = vld [vmem:[%s1 + $0x98] sm:$0xff]
    %v54 = vld [vmem:[%s1 + $0xa0] sm:$0xff]
    %v55 = vld [vmem:[%s1 + $0xa8] sm:$0xff]
    %v56 = vld [vmem:[%s1 + $0xb0] sm:$0xff]
    %v57 = vld [vmem:[%s1 + $0xb8] sm:$0xff]
    %v58 = vld [vmem:[%s1 + $0xc0] sm:$0xff]
    %v59 = vld [vmem:[%s1 + $0xc8] sm:$0xff]
    %v60 = vld [vmem:[%s1 + $0xd0] sm:$0xff]
    %v61 = vld [vmem:[%s1 + $0xd8] sm:$0xff]
    %v62 = vld [vmem:[%s1 + $0xe0] sm:$0xff]
    %v63 = vld [vmem:[%s1 + $0xe8] sm:$0xff]
    %v64 = vld [vmem:[%s1 + $0xf0] sm:$0xff]
    %v65 = vld [vmem:[%s1 + $0xf8] sm:$0xff]
    %v66 = vld [vmem:[%s1 + $0x100] sm:$0xff]
    %v67 = vld [vmem:[%s1 + $0x108] sm:$0xff]
    %v68 = vld [vmem:[%s1 + $0x110] sm:$0xff]
    %v69 = vld [vmem:[%s1 + $0x118] sm:$0xff]
    %v70 = vld [vmem:[%s1 + $0x120] sm:$0xff]
    %v71 = vld [vmem:[%s1 + $0x128] sm:$0xff]
    %v72 = vld [vmem:[%s1 + $0x130] sm:$0xff]
    %v73 = vld [vmem:[%s1 + $0x138] sm:$0xff]
    %v74 = vld [vmem:[%s1 + $0x140] sm:$0xff]
    %v75 = vld [vmem:[%s1 + $0x148] sm:$0xff]
    %v76 = vld [vmem:[%s1 + $0x150] sm:$0xff]
    %v77 = vld [vmem:[%s1 + $0x158] sm:$0xff]
    %v78 = vld [vmem:[%s1 + $0x160] sm:$0xff]
    %v79 = vld [vmem:[%s1 + $0x168] sm:$0xff]
    %v80 = vld [vmem:[%s1 + $0x170] sm:$0xff]
    %v81 = vld [vmem:[%s1 + $0x178] sm:$0xff]
    %v82 = vld [vmem:[%s1 + $0x180] sm:$0xff]
    %v83 = vld [vmem:[%s1 + $0x188] sm:$0xff]
    %v84 = vld [vmem:[%s1 + $0x190] sm:$0xff]
    %v85 = vld [vmem:[%s1 + $0x198] sm:$0xff]
    %v86 = vld [vmem:[%s1 + $0x1a0] sm:$0xff]
    %v87 = vld [vmem:[%s1 + $0x1a8] sm:$0xff]
    %v88 = vld [vmem:[%s1 + $0x1b0] sm:$0xff]
    %v89 = vld [vmem:[%s1 + $0x1b8] sm:$0xff]
    %v90 = vld [vmem:[%s1 + $0x1c0] sm:$0xff]
    %v91 = vld [vmem:[%s1 + $0x1c8] sm:$0xff]
    %v92 = vld [vmem:[%s1 + $0x1d0] sm:$0xff]
    %v93 = vld [vmem:[%s1 + $0x1d8] sm:$0xff]
    %v94 = vld [vmem:[%s1 + $0x1e0] sm:$0xff]
    %v95 = vld [vmem:[%s1 + $0x1e8] sm:$0xff]
    %v96 = vld [vmem:[%s1 + $0x1f0] sm:$0xff]
    %v97 = vld [vmem:[%s1 + $0x1f8] sm:$0xff]
    %v98 = vld [vmem:[%s1 + $0x200] sm:$0xff]
    %v99 = vld [vmem:[%s1 + $0x208] sm:$0xff]
    %v100 = vld [vmem:[%s1 + $0x210] sm:$0xff]
    %v101 = vld [vmem:[%s1 + $0x218] sm:$0xff]
    %v102 = vld [vmem:[%s1 + $0x220] sm:$0xff]
    %v103 = vld [vmem:[%s1 + $0x228] sm:$0xff]
    %v104 = vld [vmem:[%s1 + $0x230] sm:$0xff]
    %v105 = vld [vmem:[%s1 + $0x238] sm:$0xff]
    %v106 = vld [vmem:[%s1 + $0x240] sm:$0xff]
    %v107 = vld [vmem:[%s1 + $0x248] sm:$0xff]
    %v108 = vld [vmem:[%s1 + $0x250] sm:$0xff]
    %v109 = vld [vmem:[%s1 + $0x258] sm:$0xff]
    %v110 = vld [vmem:[%s1 + $0x260] sm:$0xff]
    %v111 = vld [vmem:[%s1 + $0x268] sm:$0xff]
    %v112 = vld [vmem:[%s1 + $0x270] sm:$0xff]
    %v113 = vld [vmem:[%s1 + $0x278] sm:$0xff]
    %v114 = vld [vmem:[%s1 + $0x280] sm:$0xff]
    %v115 = vld [vmem:[%s1 + $0x288] sm:$0xff]
    %v116 = vld [vmem:[%s1 + $0x290] sm:$0xff]
    %v117 = vld [vmem:[%s1 + $0x298] sm:$0xff]
    %v118 = vld [vmem:[%s1 + $0x2a0] sm:$0xff]
    %v119 = vld [vmem:[%s1 + $0x2a8] sm:$0xff]
    %v120 = vld [vmem:[%s1 + $0x2b0] sm:$0xff]
    %v121 = vld [vmem:[%s1 + $0x2b8] sm:$0xff]
    %v122 = vld [vmem:[%s1 + $0x2c0] sm:$0xff]
    %v123 = vld [vmem:[%s1 + $0x2c8] sm:$0xff]
    %v124 = vld [vmem:[%s1 + $0x2d0] sm:$0xff]
    %v125 = vld [vmem:[%s1 + $0x2d8] sm:$0xff]
    %v126 = vld [vmem:[%s1 + $0x2e0] sm:$0xff]
    %v127 = vld [vmem:[%s1 + $0x2e8] sm:$0xff]
    %v128 = vld [vmem:[%s1 + $0x2f0] sm:$0xff]
    %v129 = vld [vmem:[%s1 + $0x2f8] sm:$0xff]
    %v130 = vld [vmem:[%s1 + $0x300] sm:$0xff]
    %v131 = vld [vmem:[%s1 + $0x308] sm:$0xff]
    %v132 = vld [vmem:[%s1 + $0x310] sm:$0xff]
    %v133 = vld [vmem:[%s1 + $0x318] sm:$0xff]
    %v134 = vld [vmem:[%s1 + $0x320] sm:$0xff]
    %v135 = vld [vmem:[%s1 + $0x328] sm:$0xff]
    %v136 = vld [vmem:[%s1 + $0x330] sm:$0xff]
    %v137 = vld [vmem:[%s1 + $0x338] sm:$0xff]
    %v138 = vld [vmem:[%s1 + $0x340] sm:$0xff]
    %v139 = vld [vmem:[%s1 + $0x348] sm:$0xff]
    %v140 = vld [vmem:[%s1 + $0x350] sm:$0xff]
    %v141 = vld [vmem:[%s1 + $0x358] sm:$0xff]
    %v142 = vld [vmem:[%s1 + $0x360] sm:$0xff]
    %v143 = vld [vmem:[%s1 + $0x368] sm:$0xff]
    %v144 = vld [vmem:[%s1 + $0x370] sm:$0xff]
    %v145 = vld [vmem:[%s1 + $0x378] sm:$0xff]
    %v146 = vld [vmem:[%s1 + $0x380] sm:$0xff]
    %v147 = vld [vmem:[%s1 + $0x388] sm:$0xff]
    %v148 = vld [vmem:[%s1 + $0x390] sm:$0xff]
    %v149 = vld [vmem:[%s1 + $0x398] sm:$0xff]
    %v150 = vld [vmem:[%s1 + $0x3a0] sm:$0xff]
    %v151 = vld [vmem:[%s1 + $0x3a8] sm:$0xff]
    %v152 = vld [vmem:[%s1 + $0x3b0] sm:$0xff]
    %v153 = vld [vmem:[%s1 + $0x3b8] sm:$0xff]
    %v154 = vld [vmem:[%s1 + $0x3c0] sm:$0xff]
    %v155 = vld [vmem:[%s1 + $0x3c8] sm:$0xff]
    %v156 = vld [vmem:[%s1 + $0x3d0] sm:$0xff]
    %v157 = vld [vmem:[%s1 + $0x3d8] sm:$0xff]
    %v158 = vld [vmem:[%s1 + $0x3e0] sm:$0xff]
    %v159 = vld [vmem:[%s1 + $0x3e8] sm:$0xff]
    %v160 = vld [vmem:[%s1 + $0x3f0] sm:$0xff]
    %v161 = vld [vmem:[%s1 + $0x3f8] sm:$0xff]
    %v162 = vld [vmem:[%s1 + $0x400] sm:$0xff]
    %v163 = vld [vmem:[%s1 + $0x408] sm:$0xff]
    %v164 = vld [vmem:[%s1 + $0x410] sm:$0xff]
    %v165 = vld [vmem:[%s1 + $0x418] sm:$0xff]
    %v166 = vld [vmem:[%s1 + $0x420] sm:$0xff]
    %v167 = vld [vmem:[%s1 + $0x428] sm:$0xff]
    %v168 = vld [vmem:[%s1 + $0x430] sm:$0xff]
    %v169 = vld [vmem:[%s1 + $0x438] sm:$0xff]
    %v170 = vld [vmem:[%s1 + $0x440] sm:$0xff]
    %v171 = vld [vmem:[%s1 + $0x448] sm:$0xff]
    %v172 = vld [vmem:[%s1 + $0x450] sm:$0xff]
    %v173 = vld [vmem:[%s1 + $0x458] sm:$0xff]
    %v174 = vld [vmem:[%s1 + $0x460] sm:$0xff]
    %v175 = vld [vmem:[%s1 + $0x468] sm:$0xff]
    %v176 = vld [vmem:[%s1 + $0x470] sm:$0xff]
    %v177 = vld [vmem:[%s1 + $0x478] sm:$0xff]
    %v178 = vld [vmem:[%s1 + $0x480] sm:$0xff]
    %v179 = vld [vmem:[%s1 + $0x488] sm:$0xff]
    %v180 = vld [vmem:[%s1 + $0x490] sm:$0xff]
    %v181 = vld [vmem:[%s1 + $0x498] sm:$0xff]
    %v182 = vld [vmem:[%s1 + $0x4a0] sm:$0xff]
    %v183 = vld [vmem:[%s1 + $0x4a8] sm:$0xff]
    %v184 = vld [vmem:[%s1 + $0x4b0] sm:$0xff]
    %v185 = vld [vmem:[%s1 + $0x4b8] sm:$0xff]
    %v186 = vld [vmem:[%s1 + $0x4c0] sm:$0xff]
    %v187 = vld [vmem:[%s1 + $0x4c8] sm:$0xff]
    %v188 = vld [vmem:[%s1 + $0x4d0] sm:$0xff]
    %v189 = vld [vmem:[%s1 + $0x4d8] sm:$0xff]
    %v190 = vld [vmem:[%s1 + $0x4e0] sm:$0xff]
    %v191 = vld [vmem:[%s1 + $0x4e8] sm:$0xff]
    %v192 = vld [vmem:[%s1 + $0x4f0] sm:$0xff]
    %v193 = vld [vmem:[%s1 + $0x4f8] sm:$0xff]
    %v194 = vld [vmem:[%s1 + $0x500] sm:$0xff]
    %v195 = vld [vmem:[%s1 + $0x508] sm:$0xff]
    %v196 = vld [vmem:[%s1 + $0x510] sm:$0xff]
    %v197 = vld [vmem:[%s1 + $0x518] sm:$0xff]
    %v198 = vld [vmem:[%s1 + $0x520] sm:$0xff]
    %v199 = vld [vmem:[%s1 + $0x528] sm:$0xff]
    %v200 = vld [vmem:[%s1 + $0x530] sm:$0xff]
    %v201 = vld [vmem:[%s1 + $0x538] sm:$0xff]
    %v202 = vld [vmem:[%s1 + $0x540] sm:$0xff]
    %v203 = vld [vmem:[%s1 + $0x548] sm:$0xff]
    %v204 = vld [vmem:[%s1 + $0x550] sm:$0xff]
    %v205 = vld [vmem:[%s1 + $0x558] sm:$0xff]
    %v206 = vld [vmem:[%s1 + $0x560] sm:$0xff]
    %v207 = vld [vmem:[%s1 + $0x568] sm:$0xff]
    %v208 = vld [vmem:[%s1 + $0x570] sm:$0xff]
    %v209 = vld [vmem:[%s1 + $0x578] sm:$0xff]
    %v210 = vld [vmem:[%s1 + $0x580] sm:$0xff]
    %v211 = vld [vmem:[%s1 + $0x588] sm:$0xff]
    %v212 = vld [vmem:[%s1 + $0x590] sm:$0xff]
    %v213 = vld [vmem:[%s1 + $0x598] sm:$0xff]
    %v214 = vld [vmem:[%s1 + $0x5a0] sm:$0xff]
    %v215 = vld [vmem:[%s1 + $0x5a8] sm:$0xff]
    %v216 = vld [vmem:[%s1 + $0x5b0] sm:$0xff]
    %v217 = vld [vmem:[%s1 + $0x5b8] sm:$0xff]
    %v218 = vld [vmem:[%s1 + $0x5c0] sm:$0xff]
    %v219 = vld [vmem:[%s1 + $0x5c8] sm:$0xff]
    %v220 = vld [vmem:[%s1 + $0x5d0] sm:$0xff]
    %v221 = vld [vmem:[%s1 + $0x5d8] sm:$0xff]
    %v222 = vld [vmem:[%s1 + $0x5e0] sm:$0xff]
    %v223 = vld [vmem:[%s1 + $0x5e8] sm:$0xff]
    %v224 = vld [vmem:[%s1 + $0x5f0] sm:$0xff]
    %v225 = vld [vmem:[%s1 + $0x5f8] sm:$0xff]
    %v226 = vld [vmem:[%s1 + $0x600] sm:$0xff]
    %v227 = vld [vmem:[%s1 + $0x608] sm:$0xff]
    %v228 = vld [vmem:[%s1 + $0x610] sm:$0xff]
    %v229 = vld [vmem:[%s1 + $0x618] sm:$0xff]
    %v230 = vld [vmem:[%s1 + $0x620] sm:$0xff]
    %v231 = vld [vmem:[%s1 + $0x628] sm:$0xff]
    %v232 = vld [vmem:[%s1 + $0x630] sm:$0xff]
    %v233 = vld [vmem:[%s1 + $0x638] sm:$0xff]
    %v234 = vld [vmem:[%s1 + $0x640] sm:$0xff]
    %v235 = vld [vmem:[%s1 + $0x648] sm:$0xff]
    %v236 = vld [vmem:[%s1 + $0x650] sm:$0xff]
    %v237 = vld [vmem:[%s1 + $0x658] sm:$0xff]
    %v238 = vld [vmem:[%s1 + $0x660] sm:$0xff]
    %v239 = vld [vmem:[%s1 + $0x668] sm:$0xff]
    %v240 = vld [vmem:[%s1 + $0x670] sm:$0xff]
    %v241 = vld [vmem:[%s1 + $0x678] sm:$0xff]
    %v242 = vld [vmem:[%s1 + $0x680] sm:$0xff]
    %v243 = vld [vmem:[%s1 + $0x688] sm:$0xff]
    %v244 = vld [vmem:[%s1 + $0x690] sm:$0xff]
    %v245 = vld [vmem:[%s1 + $0x698] sm:$0xff]
    %v246 = vld [vmem:[%s1 + $0x6a0] sm:$0xff]
    %v247 = vld [vmem:[%s1 + $0x6a8] sm:$0xff]
    %v248 = vld [vmem:[%s1 + $0x6b0] sm:$0xff]
    %v249 = vld [vmem:[%s1 + $0x6b8] sm:$0xff]
    %v250 = vld [vmem:[%s1 + $0x6c0] sm:$0xff]
    %v251 = vld [vmem:[%s1 + $0x6c8] sm:$0xff]
    %v252 = vld [vmem:[%s1 + $0x6d0] sm:$0xff]
    %v253 = vld [vmem:[%s1 + $0x6d8] sm:$0xff]
    %v254 = vld [vmem:[%s1 + $0x6e0] sm:$0xff]
    %v255 = vld [vmem:[%s1 + $0x6e8] sm:$0xff]
    %v256 = vld [vmem:[%s1 + $0x6f0] sm:$0xff]
    %v257 = vld [vmem:[%s1 + $0x6f8] sm:$0xff]
    %v258 = vld [vmem:[%s1 + $0x700] sm:$0xff]
    %v259 = vld [vmem:[%s1 + $0x708] sm:$0xff]
    %v260 = vld [vmem:[%s1 + $0x710] sm:$0xff]
    %v261 = vld [vmem:[%s1 + $0x718] sm:$0xff]
    %v262 = vld [vmem:[%s1 + $0x720] sm:$0xff]
    %v263 = vld [vmem:[%s1 + $0x728] sm:$0xff]
    %v264 = vld [vmem:[%s1 + $0x730] sm:$0xff]
    %v265 = vld [vmem:[%s1 + $0x738] sm:$0xff]
    %v266 = vld [vmem:[%s1 + $0x740] sm:$0xff]
    %v267 = vld [vmem:[%s1 + $0x748] sm:$0xff]
    %v268 = vld [vmem:[%s1 + $0x750] sm:$0xff]
    %v269 = vld [vmem:[%s1 + $0x758] sm:$0xff]
    %v270 = vld [vmem:[%s1 + $0x760] sm:$0xff]
    %v271 = vld [vmem:[%s1 + $0x768] sm:$0xff]
    %v272 = vld [vmem:[%s1 + $0x770] sm:$0xff]
    %v273 = vld [vmem:[%s1 + $0x778] sm:$0xff]
    %v274 = vld [vmem:[%s1 + $0x780] sm:$0xff]
    %v275 = vld [vmem:[%s1 + $0x788] sm:$0xff]
    %v276 = vld [vmem:[%s1 + $0x790] sm:$0xff]
    %v277 = vld [vmem:[%s1 + $0x798] sm:$0xff]
    %v278 = vld [vmem:[%s1 + $0x7a0] sm:$0xff]
    %v279 = vld [vmem:[%s1 + $0x7a8] sm:$0xff]
    %v280 = vld [vmem:[%s1 + $0x7b0] sm:$0xff]
    %v281 = vld [vmem:[%s1 + $0x7b8] sm:$0xff]
    %v282 = vld [vmem:[%s1 + $0x7c0] sm:$0xff]
    %v283 = vld [vmem:[%s1 + $0x7c8] sm:$0xff]
    %v284 = vld [vmem:[%s1 + $0x7d0] sm:$0xff]
    %v285 = vld [vmem:[%s1 + $0x7d8] sm:$0xff]
    %v286 = vld [vmem:[%s1 + $0x7e0] sm:$0xff]
    %v287 = vld [vmem:[%s1 + $0x7e8] sm:$0xff]
    %v288 = vld [vmem:[%s1 + $0x7f0] sm:$0xff]
    %v289 = vld [vmem:[%s1 + $0x7f8] sm:$0xff]
    %v290 = vld [vmem:[%s1 + $0x800] sm:$0xff]
    %v291 = vld [vmem:[%s1 + $0x808] sm:$0xff]
    %v292 = vld [vmem:[%s1 + $0x810] sm:$0xff]
    %v293 = vld [vmem:[%s1 + $0x818] sm:$0xff]
    %v294 = vld [vmem:[%s1 + $0x820] sm:$0xff]
    %v295 = vld [vmem:[%s1 + $0x828] sm:$0xff]
    %v296 = vld [vmem:[%s1 + $0x830] sm:$0xff]
    %v297 = vld [vmem:[%s1 + $0x838] sm:$0xff]
    %v298 = vld [vmem:[%s1 + $0x840] sm:$0xff]
    %v299 = vld [vmem:[%s1 + $0x848] sm:$0xff]
    %v300 = vld [vmem:[%s1 + $0x850] sm:$0xff]
    %v301 = vld [vmem:[%s1 + $0x858] sm:$0xff]
    %v302 = vld [vmem:[%s1 + $0x860] sm:$0xff]
    %v303 = vld [vmem:[%s1 + $0x868] sm:$0xff]
    %v304 = vld [vmem:[%s1 + $0x870] sm:$0xff]
    %v305 = vld [vmem:[%s1 + $0x878] sm:$0xff]
    %v306 = vld [vmem:[%s1 + $0x880] sm:$0xff]
    %v307 = vld [vmem:[%s1 + $0x888] sm:$0xff]
    %v308 = vld [vmem:[%s1 + $0x890] sm:$0xff]
    %v309 = vld [vmem:[%s1 + $0x898] sm:$0xff]
    %v310 = vld [vmem:[%s1 + $0x8a0] sm:$0xff]
    %v311 = vld [vmem:[%s1 + $0x8a8] sm:$0xff]
    %v312 = vld [vmem:[%s1 + $0x8b0] sm:$0xff]
    %v313 = vld [vmem:[%s1 + $0x8b8] sm:$0xff]
    %v314 = vld [vmem:[%s1 + $0x8c0] sm:$0xff]
    %v315 = vld [vmem:[%s1 + $0x8c8] sm:$0xff]
    %v316 = vld [vmem:[%s1 + $0x8d0] sm:$0xff]
    %v317 = vld [vmem:[%s1 + $0x8d8] sm:$0xff]
    %v318 = vld [vmem:[%s1 + $0x8e0] sm:$0xff]
    %v319 = vld [vmem:[%s1 + $0x8e8] sm:$0xff]
    %v320 = vld [vmem:[%s1 + $0x8f0] sm:$0xff]
    %v321 = vld [vmem:[%s1 + $0x8f8] sm:$0xff]
    %v322 = vld [vmem:[%s1 + $0x900] sm:$0xff]
    %v323 = vld [vmem:[%s1 + $0x908] sm:$0xff]
    %v324 = vld [vmem:[%s1 + $0x910] sm:$0xff]
    %v325 = vld [vmem:[%s1 + $0x918] sm:$0xff]
    %v326 = vld [vmem:[%s1 + $0x920] sm:$0xff]
    %v327 = vld [vmem:[%s1 + $0x928] sm:$0xff]
    %v328 = vld [vmem:[%s1 + $0x930] sm:$0xff]
    %v329 = vld [vmem:[%s1 + $0x938] sm:$0xff]
    %v330 = vld [vmem:[%s1 + $0x940] sm:$0xff]
    %v331 = vld [vmem:[%s1 + $0x948] sm:$0xff]
    %v332 = vld [vmem:[%s1 + $0x950] sm:$0xff]
    %v333 = vld [vmem:[%s1 + $0x958] sm:$0xff]
    %v334 = vld [vmem:[%s1 + $0x960] sm:$0xff]
    %v335 = vld [vmem:[%s1 + $0x968] sm:$0xff]
    %v336 = vld [vmem:[%s1 + $0x970] sm:$0xff]
    %v337 = vld [vmem:[%s1 + $0x978] sm:$0xff]
    %v338 = vld [vmem:[%s1 + $0x980] sm:$0xff]
    %v339 = vld [vmem:[%s1 + $0x988] sm:$0xff]
    %v340 = vld [vmem:[%s1 + $0x990] sm:$0xff]
    %v341 = vld [vmem:[%s1 + $0x998] sm:$0xff]
    %v342 = vld [vmem:[%s1 + $0x9a0] sm:$0xff]
    %v343 = vld [vmem:[%s1 + $0x9a8] sm:$0xff]
    %v344 = vld [vmem:[%s1 + $0x9b0] sm:$0xff]
    %v345 = vld [vmem:[%s1 + $0x9b8] sm:$0xff]
    %v346 = vld [vmem:[%s1 + $0x9c0] sm:$0xff]
    %v347 = vld [vmem:[%s1 + $0x9c8] sm:$0xff]
    %v348 = vld [vmem:[%s1 + $0x9d0] sm:$0xff]
    %v349 = vld [vmem:[%s1 + $0x9d8] sm:$0xff]
    %v350 = vld [vmem:[%s1 + $0x9e0] sm:$0xff]
    %v351 = vld [vmem:[%s1 + $0x9e8] sm:$0xff]
    %v352 = vld [vmem:[%s1 + $0x9f0] sm:$0xff]
    %v353 = vld [vmem:[%s1 + $0x9f8] sm:$0xff]
    %v354 = vld [vmem:[%s1 + $0xa00] sm:$0xff]
    %v355 = vld [vmem:[%s1 + $0xa08] sm:$0xff]
    %v356 = vld [vmem:[%s1 + $0xa10] sm:$0xff]
    %v357 = vld [vmem:[%s1 + $0xa18] sm:$0xff]
    %v358 = vld [vmem:[%s1 + $0xa20] sm:$0xff]
    %v359 = vld [vmem:[%s1 + $0xa28] sm:$0xff]
    %v360 = vld [vmem:[%s1 + $0xa30] sm:$0xff]
    %v361 = vld [vmem:[%s1 + $0xa38] sm:$0xff]
    %v362 = vld [vmem:[%s1 + $0xa40] sm:$0xff]
    %v363 = vld [vmem:[%s1 + $0xa48] sm:$0xff]
    %v364 = vld [vmem:[%s1 + $0xa50] sm:$0xff]
    %v365 = vld [vmem:[%s1 + $0xa58] sm:$0xff]
    %v366 = vld [vmem:[%s1 + $0xa60] sm:$0xff]
    %v367 = vld [vmem:[%s1 + $0xa68] sm:$0xff]
    %v368 = vld [vmem:[%s1 + $0xa70] sm:$0xff]
    %v369 = vld [vmem:[%s1 + $0xa78] sm:$0xff]
    %v370 = vld [vmem:[%s1 + $0xa80] sm:$0xff]
    %v371 = vld [vmem:[%s1 + $0xa88] sm:$0xff]
    %v372 = vld [vmem:[%s1 + $0xa90] sm:$0xff]
    %v373 = vld [vmem:[%s1 + $0xa98] sm:$0xff]
    %v374 = vld [vmem:[%s1 + $0xaa0] sm:$0xff]
    %v375 = vld [vmem:[%s1 + $0xaa8] sm:$0xff]
    %v376 = vld [vmem:[%s1 + $0xab0] sm:$0xff]
    %v377 = vld [vmem:[%s1 + $0xab8] sm:$0xff]
    %v378 = vld [vmem:[%s1 + $0xac0] sm:$0xff]
    %v379 = vld [vmem:[%s1 + $0xac8] sm:$0xff]
    %v380 = vld [vmem:[%s1 + $0xad0] sm:$0xff]
    %v381 = vld [vmem:[%s1 + $0xad8] sm:$0xff]
    %v382 = vld [vmem:[%s1 + $0xae0] sm:$0xff]
    %v383 = vld [vmem:[%s1 + $0xae8] sm:$0xff]
    %v384 = vld [vmem:[%s1 + $0xaf0] sm:$0xff]
    %v385 = vld [vmem:[%s1 + $0xaf8] sm:$0xff]
    %v386 = vld [vmem:[%s1 + $0xb00] sm:$0xff]
    %v387 = vld [vmem:[%s1 + $0xb08] sm:$0xff]
    %v388 = vld [vmem:[%s1 + $0xb10] sm:$0xff]
    %v389 = vld [vmem:[%s1 + $0xb18] sm:$0xff]
    %v390 = vld [vmem:[%s1 + $0xb20] sm:$0xff]
    %v391 = vld [vmem:[%s1 + $0xb28] sm:$0xff]
    %v392 = vld [vmem:[%s1 + $0xb30] sm:$0xff]
    %v393 = vld [vmem:[%s1 + $0xb38] sm:$0xff]
    %v394 = vld [vmem:[%s1 + $0xb40] sm:$0xff]
    %v395 = vld [vmem:[%s1 + $0xb48] sm:$0xff]
    %v396 = vld [vmem:[%s1 + $0xb50] sm:$0xff]
    %v397 = vld [vmem:[%s1 + $0xb58] sm:$0xff]
    %v398 = vld [vmem:[%s1 + $0xb60] sm:$0xff]
    %v399 = vld [vmem:[%s1 + $0xb68] sm:$0xff]
    %v400 = vld [vmem:[%s1 + $0xb70] sm:$0xff]
    %v401 = vld [vmem:[%s1 + $0xb78] sm:$0xff]
    %v402 = vld [vmem:[%s1 + $0xb80] sm:$0xff]
    %v403 = vld [vmem:[%s1 + $0xb88] sm:$0xff]
    %v404 = vld [vmem:[%s1 + $0xb90] sm:$0xff]
    %v405 = vld [vmem:[%s1 + $0xb98] sm:$0xff]
    %v406 = vld [vmem:[%s1 + $0xba0] sm:$0xff]
    %v407 = vld [vmem:[%s1 + $0xba8] sm:$0xff]
    %v408 = vld [vmem:[%s1 + $0xbb0] sm:$0xff]
    %v409 = vld [vmem:[%s1 + $0xbb8] sm:$0xff]
    %v410 = vld [vmem:[%s1 + $0xbc0] sm:$0xff]
    %v411 = vld [vmem:[%s1 + $0xbc8] sm:$0xff]
    %v412 = vld [vmem:[%s1 + $0xbd0] sm:$0xff]
    %v413 = vld [vmem:[%s1 + $0xbd8] sm:$0xff]
    %v414 = vld [vmem:[%s1 + $0xbe0] sm:$0xff]
    %v415 = vld [vmem:[%s1 + $0xbe8] sm:$0xff]
    %v416 = vld [vmem:[%s1 + $0xbf0] sm:$0xff]
    %v417 = vld [vmem:[%s1 + $0xbf8] sm:$0xff]
    %v418 = vld [vmem:[%s1 + $0xc00] sm:$0xff]
    %v419 = vld [vmem:[%s1 + $0xc08] sm:$0xff]
    %v420 = vld [vmem:[%s1 + $0xc10] sm:$0xff]
    %v421 = vld [vmem:[%s1 + $0xc18] sm:$0xff]
    %v422 = vld [vmem:[%s1 + $0xc20] sm:$0xff]
    %v423 = vld [vmem:[%s1 + $0xc28] sm:$0xff]
    %v424 = vld [vmem:[%s1 + $0xc30] sm:$0xff]
    %v425 = vld [vmem:[%s1 + $0xc38] sm:$0xff]
    %v426 = vld [vmem:[%s1 + $0xc40] sm:$0xff]
    %v427 = vld [vmem:[%s1 + $0xc48] sm:$0xff]
    %v428 = vld [vmem:[%s1 + $0xc50] sm:$0xff]
    %v429 = vld [vmem:[%s1 + $0xc58] sm:$0xff]
    %v430 = vld [vmem:[%s1 + $0xc60] sm:$0xff]
    %v431 = vld [vmem:[%s1 + $0xc68] sm:$0xff]
    %v432 = vld [vmem:[%s1 + $0xc70] sm:$0xff]
    %v433 = vld [vmem:[%s1 + $0xc78] sm:$0xff]
    %v434 = vld [vmem:[%s1 + $0xc80] sm:$0xff]
    %v435 = vld [vmem:[%s1 + $0xc88] sm:$0xff]
    %v436 = vld [vmem:[%s1 + $0xc90] sm:$0xff]
    %v437 = vld [vmem:[%s1 + $0xc98] sm:$0xff]
    %v438 = vld [vmem:[%s1 + $0xca0] sm:$0xff]
    %v439 = vld [vmem:[%s1 + $0xca8] sm:$0xff]
    %v440 = vld [vmem:[%s1 + $0xcb0] sm:$0xff]
    %v441 = vld [vmem:[%s1 + $0xcb8] sm:$0xff]
    %v442 = vld [vmem:[%s1 + $0xcc0] sm:$0xff]
    %v443 = vld [vmem:[%s1 + $0xcc8] sm:$0xff]
    %v444 = vld [vmem:[%s1 + $0xcd0] sm:$0xff]
    %v445 = vld [vmem:[%s1 + $0xcd8] sm:$0xff]
    %v446 = vld [vmem:[%s1 + $0xce0] sm:$0xff]
    %v447 = vld [vmem:[%s1 + $0xce8] sm:$0xff]
    %v448 = vld [vmem:[%s1 + $0xcf0] sm:$0xff]
    %v449 = vld [vmem:[%s1 + $0xcf8] sm:$0xff]
    %v450 = vld [vmem:[%s1 + $0xd00] sm:$0xff]
    %v451 = vld [vmem:[%s1 + $0xd08] sm:$0xff]
    %v452 = vld [vmem:[%s1 + $0xd10] sm:$0xff]
    %v453 = vld [vmem:[%s1 + $0xd18] sm:$0xff]
    %v454 = vld [vmem:[%s1 + $0xd20] sm:$0xff]
    %v455 = vld [vmem:[%s1 + $0xd28] sm:$0xff]
    %v456 = vld [vmem:[%s1 + $0xd30] sm:$0xff]
    %v457 = vld [vmem:[%s1 + $0xd38] sm:$0xff]
    %v458 = vld [vmem:[%s1 + $0xd40] sm:$0xff]
    %v459 = vld [vmem:[%s1 + $0xd48] sm:$0xff]
    %v460 = vld [vmem:[%s1 + $0xd50] sm:$0xff]
    %v461 = vld [vmem:[%s1 + $0xd58] sm:$0xff]
    %v462 = vld [vmem:[%s1 + $0xd60] sm:$0xff]
    %v463 = vld [vmem:[%s1 + $0xd68] sm:$0xff]
    %v464 = vld [vmem:[%s1 + $0xd70] sm:$0xff]
    %v465 = vld [vmem:[%s1 + $0xd78] sm:$0xff]
    %v466 = vld [vmem:[%s1 + $0xd80] sm:$0xff]
    %v467 = vld [vmem:[%s1 + $0xd88] sm:$0xff]
    %v468 = vld [vmem:[%s1 + $0xd90] sm:$0xff]
    %v469 = vld [vmem:[%s1 + $0xd98] sm:$0xff]
    %v470 = vld [vmem:[%s1 + $0xda0] sm:$0xff]
    %v471 = vld [vmem:[%s1 + $0xda8] sm:$0xff]
    %v472 = vld [vmem:[%s1 + $0xdb0] sm:$0xff]
    %v473 = vld [vmem:[%s1 + $0xdb8] sm:$0xff]
    %v474 = vld [vmem:[%s1 + $0xdc0] sm:$0xff]
    %v475 = vld [vmem:[%s1 + $0xdc8] sm:$0xff]
    %v476 = vld [vmem:[%s1 + $0xdd0] sm:$0xff]
    %v477 = vld [vmem:[%s1 + $0xdd8] sm:$0xff]
    %v478 = vld [vmem:[%s1 + $0xde0] sm:$0xff]
    %v479 = vld [vmem:[%s1 + $0xde8] sm:$0xff]
    %v480 = vld [vmem:[%s1 + $0xdf0] sm:$0xff]
    %v481 = vld [vmem:[%s1 + $0xdf8] sm:$0xff]
    %v482 = vld [vmem:[%s1 + $0xe00] sm:$0xff]
    %v483 = vld [vmem:[%s1 + $0xe08] sm:$0xff]
    %v484 = vld [vmem:[%s1 + $0xe10] sm:$0xff]
    %v485 = vld [vmem:[%s1 + $0xe18] sm:$0xff]
    %v486 = vld [vmem:[%s1 + $0xe20] sm:$0xff]
    %v487 = vld [vmem:[%s1 + $0xe28] sm:$0xff]
    %v488 = vld [vmem:[%s1 + $0xe30] sm:$0xff]
    %v489 = vld [vmem:[%s1 + $0xe38] sm:$0xff]
    %v490 = vld [vmem:[%s1 + $0xe40] sm:$0xff]
    %v491 = vld [vmem:[%s1 + $0xe48] sm:$0xff]
    %v492 = vld [vmem:[%s1 + $0xe50] sm:$0xff]
    %v493 = vld [vmem:[%s1 + $0xe58] sm:$0xff]
    %v494 = vld [vmem:[%s1 + $0xe60] sm:$0xff]
    %v495 = vld [vmem:[%s1 + $0xe68] sm:$0xff]
    %v496 = vld [vmem:[%s1 + $0xe70] sm:$0xff]
    %v497 = vld [vmem:[%s1 + $0xe78] sm:$0xff]
    %v498 = vld [vmem:[%s1 + $0xe80] sm:$0xff]
    %v499 = vld [vmem:[%s1 + $0xe88] sm:$0xff]
    %v500 = vld [vmem:[%s1 + $0xe90] sm:$0xff]
    %v501 = vld [vmem:[%s1 + $0xe98] sm:$0xff]
    %v502 = vld [vmem:[%s1 + $0xea0] sm:$0xff]
    %v503 = vld [vmem:[%s1 + $0xea8] sm:$0xff]
    %v504 = vld [vmem:[%s1 + $0xeb0] sm:$0xff]
    %v505 = vld [vmem:[%s1 + $0xeb8] sm:$0xff]
    %v506 = vld [vmem:[%s1 + $0xec0] sm:$0xff]
    %v507 = vld [vmem:[%s1 + $0xec8] sm:$0xff]
    %v508 = vld [vmem:[%s1 + $0xed0] sm:$0xff]
    %v509 = vld [vmem:[%s1 + $0xed8] sm:$0xff]
    %v510 = vld [vmem:[%s1 + $0xee0] sm:$0xff]
    %v511 = vld [vmem:[%s1 + $0xee8] sm:$0xff]
    %v512 = vld [vmem:[%s1 + $0xef0] sm:$0xff]
    %v513 = vld [vmem:[%s1 + $0xef8] sm:$0xff]
    %v514 = vld [vmem:[%s1 + $0xf00] sm:$0xff]
    %v515 = vld [vmem:[%s1 + $0xf08] sm:$0xff]
    %v516 = vld [vmem:[%s1 + $0xf10] sm:$0xff]
    %v517 = vld [vmem:[%s1 + $0xf18] sm:$0xff]
    %v518 = vld [vmem:[%s1 + $0xf20] sm:$0xff]
    %v519 = vld [vmem:[%s1 + $0xf28] sm:$0xff]
    %v520 = vld [vmem:[%s1 + $0xf30] sm:$0xff]
    %v521 = vld [vmem:[%s1 + $0xf38] sm:$0xff]
    %v522 = vld [vmem:[%s1 + $0xf40] sm:$0xff]
    %v523 = vld [vmem:[%s1 + $0xf48] sm:$0xff]
    %v524 = vld [vmem:[%s1 + $0xf50] sm:$0xff]
    %v525 = vld [vmem:[%s1 + $0xf58] sm:$0xff]
    %v526 = vld [vmem:[%s1 + $0xf60] sm:$0xff]
    %v527 = vld [vmem:[%s1 + $0xf68] sm:$0xff]
    %v528 = vld [vmem:[%s1 + $0xf70] sm:$0xff]
    %v529 = vld [vmem:[%s1 + $0xf78] sm:$0xff]
    %v530 = vld [vmem:[%s1 + $0xf80] sm:$0xff]
    %v531 = vld [vmem:[%s1 + $0xf88] sm:$0xff]
    %v532 = vld [vmem:[%s1 + $0xf90] sm:$0xff]
    %v533 = vld [vmem:[%s1 + $0xf98] sm:$0xff]
    %v534 = vld [vmem:[%s1 + $0xfa0] sm:$0xff]
    %v535 = vld [vmem:[%s1 + $0xfa8] sm:$0xff]
    %v536 = vld [vmem:[%s1 + $0xfb0] sm:$0xff]
    %v537 = vld [vmem:[%s1 + $0xfb8] sm:$0xff]
    %v538 = vld [vmem:[%s1 + $0xfc0] sm:$0xff]
    %v539 = vld [vmem:[%s1 + $0xfc8] sm:$0xff]
    %v540 = vld [vmem:[%s1 + $0xfd0] sm:$0xff]
    %v541 = vld [vmem:[%s1 + $0xfd8] sm:$0xff]
    %v542 = vld [vmem:[%s1 + $0xfe0] sm:$0xff]
    %v543 = vld [vmem:[%s1 + $0xfe8] sm:$0xff]
    %v544 = vld [vmem:[%s1 + $0xff0] sm:$0xff]
    %v545 = vld [vmem:[%s1 + $0xff8] sm:$0xff]
    %v546 = vld [vmem:[%s6] sm:$0xf]
    %v548 = vlaneseq
    %v549 = vshrl.u32 %v548, 7
    %v550 = vsub.s32 0, %v549
    %v551 = vrot.slane %v546, %v550
    %v552 = vlaneseq
    %v553 = vshrl.u32 %v552, 7
    %v554 = vsub.s32 1, %v553
    %v555 = vrot.slane %v546, %v554
    %v556 = vlaneseq
    %v557 = vshrl.u32 %v556, 7
    %v558 = vsub.s32 2, %v557
    %v559 = vrot.slane %v546, %v558
    %v560 = vlaneseq
    %v561 = vshrl.u32 %v560, 7
    %v562 = vsub.s32 3, %v561
    %v563 = vrot.slane %v546, %v562
    %v570 = vcombine.high %v32, %v32
    %v572 = vunpack.c.l.s4 1983009808
    %v573 = vunpack.c.0.s8 %v572
    %v574 = vlaneseq
    %v575 = vshrl.u32 %v574, 7
    %v576 = vsub.s32 %v573, %v575
    %v577 = vrot.slane %v32, %v576
    %v579 = vunpack.c.l.s4 1983009808
    %v580 = vunpack.c.0.s8 %v579
    %v581 = vlaneseq
    %v582 = vshrl.u32 %v581, 7
    %v583 = vsub.s32 %v580, %v582
    %v584 = vrot.slane %v570, %v583
    %v585 = vcombine.high %v577, %v577
    %v586 = vcombine.high %v584, %v584
    %v587 = vcombine.high %v33, %v33
    %v589 = vunpack.c.l.s4 1983009808
    %v590 = vunpack.c.0.s8 %v589
    %v591 = vlaneseq
    %v592 = vshrl.u32 %v591, 7
    %v593 = vsub.s32 %v590, %v592
    %v594 = vrot.slane %v33, %v593
    %v596 = vunpack.c.l.s4 1983009808
    %v597 = vunpack.c.0.s8 %v596
    %v598 = vlaneseq
    %v599 = vshrl.u32 %v598, 7
    %v600 = vsub.s32 %v597, %v599
    %v601 = vrot.slane %v587, %v600
    %v602 = vcombine.high %v594, %v594
    %v603 = vcombine.high %v601, %v601
    %612 = vmatprep.subr.mxu0 %v95
    %613 = vmatpush1.msra.mxu0 %v94
    %614 = vmatprep.subr.mxu0 %v91
    %615 = vmatpush1.msra.mxu0 %v90
    %616 = vmatprep.subr.mxu0 %v87
    %617 = vmatpush1.msra.mxu0 %v86
    %618 = vmatprep.subr.mxu0 %v83
    %619 = vmatpush1.msra.mxu0 %v82
    %620 = vmatprep.subr.mxu0 %v79
    %621 = vmatpush1.msra.mxu0 %v78
    %622 = vmatprep.subr.mxu0 %v75
    %623 = vmatpush1.msra.mxu0 %v74
    %624 = vmatprep.subr.mxu0 %v71
    %625 = vmatpush1.msra.mxu0 %v70
    %626 = vmatprep.subr.mxu0 %v67
    %627 = vmatpush1.msra.mxu0 %v66
    %628 = vmatprep.subr.mxu0 %v63
    %629 = vmatpush1.msra.mxu0 %v62
    %630 = vmatprep.subr.mxu0 %v59
    %631 = vmatpush1.msra.mxu0 %v58
    %632 = vmatprep.subr.mxu0 %v55
    %633 = vmatpush1.msra.mxu0 %v54
    %634 = vmatprep.subr.mxu0 %v51
    %635 = vmatpush1.msra.mxu0 %v50
    %636 = vmatprep.subr.mxu0 %v47
    %637 = vmatpush1.msra.mxu0 %v46
    %638 = vmatprep.subr.mxu0 %v43
    %639 = vmatpush1.msra.mxu0 %v42
    %640 = vmatprep.subr.mxu0 %v39
    %641 = vmatpush1.msra.mxu0 %v38
    %642 = vmatprep.subr.mxu0 %v35
    %643 = vmatpush1.msra.mxu0 %v34
    %644 = vmatprep.subr.mxu0 %v159
    %645 = vmatpush2.msra.mxu0 %v158
    %646 = vmatprep.subr.mxu0 %v155
    %647 = vmatpush2.msra.mxu0 %v154
    %648 = vmatprep.subr.mxu0 %v151
    %649 = vmatpush2.msra.mxu0 %v150
    %650 = vmatprep.subr.mxu0 %v147
    %651 = vmatpush2.msra.mxu0 %v146
    %652 = vmatprep.subr.mxu0 %v143
    %653 = vmatpush2.msra.mxu0 %v142
    %654 = vmatprep.subr.mxu0 %v139
    %655 = vmatpush2.msra.mxu0 %v138
    %656 = vmatprep.subr.mxu0 %v135
    %657 = vmatpush2.msra.mxu0 %v134
    %658 = vmatprep.subr.mxu0 %v131
    %659 = vmatpush2.msra.mxu0 %v130
    %660 = vmatprep.subr.mxu0 %v127
    %661 = vmatpush2.msra.mxu0 %v126
    %662 = vmatprep.subr.mxu0 %v123
    %663 = vmatpush2.msra.mxu0 %v122
    %664 = vmatprep.subr.mxu0 %v119
    %665 = vmatpush2.msra.mxu0 %v118
    %666 = vmatprep.subr.mxu0 %v115
    %667 = vmatpush2.msra.mxu0 %v114
    %668 = vmatprep.subr.mxu0 %v111
    %669 = vmatpush2.msra.mxu0 %v110
    %670 = vmatprep.subr.mxu0 %v107
    %671 = vmatpush2.msra.mxu0 %v106
    %672 = vmatprep.subr.mxu0 %v103
    %673 = vmatpush2.msra.mxu0 %v102
    %674 = vmatprep.subr.mxu0 %v99
    %675 = vmatpush2.msra.mxu0 %v98
    %676 = vmatprep.mubr.f32.mxu0 %v585
    %677 = vmatmul.mubr.f32.gmra.mxu0 %v577
    %v678 = vpop.f32.mrf.mxu0
    %v679 = vadd.f32 %v551, %v678
    %v680 = vpop.f32.mrf.mxu0
    %v681 = vadd.f32 %v555, %v680
    %682 = vdwg.mxu0
    %683 = vmatprep.subr.mxu0 %v223
    %684 = vmatpush1.msra.mxu0 %v222
    %685 = vmatprep.subr.mxu0 %v219
    %686 = vmatpush1.msra.mxu0 %v218
    %687 = vmatprep.subr.mxu0 %v215
    %688 = vmatpush1.msra.mxu0 %v214
    %689 = vmatprep.subr.mxu0 %v211
    %690 = vmatpush1.msra.mxu0 %v210
    %691 = vmatprep.subr.mxu0 %v207
    %692 = vmatpush1.msra.mxu0 %v206
    %693 = vmatprep.subr.mxu0 %v203
    %694 = vmatpush1.msra.mxu0 %v202
    %695 = vmatprep.subr.mxu0 %v199
    %696 = vmatpush1.msra.mxu0 %v198
    %697 = vmatprep.subr.mxu0 %v195
    %698 = vmatpush1.msra.mxu0 %v194
    %699 = vmatprep.subr.mxu0 %v191
    %700 = vmatpush1.msra.mxu0 %v190
    %701 = vmatprep.subr.mxu0 %v187
    %702 = vmatpush1.msra.mxu0 %v186
    %703 = vmatprep.subr.mxu0 %v183
    %704 = vmatpush1.msra.mxu0 %v182
    %705 = vmatprep.subr.mxu0 %v179
    %706 = vmatpush1.msra.mxu0 %v178
    %707 = vmatprep.subr.mxu0 %v175
    %708 = vmatpush1.msra.mxu0 %v174
    %709 = vmatprep.subr.mxu0 %v171
    %710 = vmatpush1.msra.mxu0 %v170
    %711 = vmatprep.subr.mxu0 %v167
    %712 = vmatpush1.msra.mxu0 %v166
    %713 = vmatprep.subr.mxu0 %v163
    %714 = vmatpush1.msra.mxu0 %v162
    %715 = vmatprep.subr.mxu0 %v287
    %716 = vmatpush2.msra.mxu0 %v286
    %717 = vmatprep.subr.mxu0 %v283
    %718 = vmatpush2.msra.mxu0 %v282
    %719 = vmatprep.subr.mxu0 %v279
    %720 = vmatpush2.msra.mxu0 %v278
    %721 = vmatprep.subr.mxu0 %v275
    %722 = vmatpush2.msra.mxu0 %v274
    %723 = vmatprep.subr.mxu0 %v271
    %724 = vmatpush2.msra.mxu0 %v270
    %725 = vmatprep.subr.mxu0 %v267
    %726 = vmatpush2.msra.mxu0 %v266
    %727 = vmatprep.subr.mxu0 %v263
    %728 = vmatpush2.msra.mxu0 %v262
    %729 = vmatprep.subr.mxu0 %v259
    %730 = vmatpush2.msra.mxu0 %v258
    %731 = vmatprep.subr.mxu0 %v255
    %732 = vmatpush2.msra.mxu0 %v254
    %733 = vmatprep.subr.mxu0 %v251
    %734 = vmatpush2.msra.mxu0 %v250
    %735 = vmatprep.subr.mxu0 %v247
    %736 = vmatpush2.msra.mxu0 %v246
    %737 = vmatprep.subr.mxu0 %v243
    %738 = vmatpush2.msra.mxu0 %v242
    %739 = vmatprep.subr.mxu0 %v239
    %740 = vmatpush2.msra.mxu0 %v238
    %741 = vmatprep.subr.mxu0 %v235
    %742 = vmatpush2.msra.mxu0 %v234
    %743 = vmatprep.subr.mxu0 %v231
    %744 = vmatpush2.msra.mxu0 %v230
    %745 = vmatprep.subr.mxu0 %v227
    %746 = vmatpush2.msra.mxu0 %v226
    %747 = vmatprep.mubr.f32.mxu0 %v586
    %748 = vmatmul.mubr.f32.gmra.mxu0 %v584
    %v749 = vpop.f32.mrf.mxu0
    %v750 = vadd.f32 %v679, %v749
    %v751 = vpop.f32.mrf.mxu0
    %v752 = vadd.f32 %v681, %v751
    %753 = vdwg.mxu0
    %754 = vmatprep.subr.mxu0 %v351
    %755 = vmatpush1.msra.mxu0 %v350
    %756 = vmatprep.subr.mxu0 %v347
    %757 = vmatpush1.msra.mxu0 %v346
    %758 = vmatprep.subr.mxu0 %v343
    %759 = vmatpush1.msra.mxu0 %v342
    %760 = vmatprep.subr.mxu0 %v339
    %761 = vmatpush1.msra.mxu0 %v338
    %762 = vmatprep.subr.mxu0 %v335
    %763 = vmatpush1.msra.mxu0 %v334
    %764 = vmatprep.subr.mxu0 %v331
    %765 = vmatpush1.msra.mxu0 %v330
    %766 = vmatprep.subr.mxu0 %v327
    %767 = vmatpush1.msra.mxu0 %v326
    %768 = vmatprep.subr.mxu0 %v323
    %769 = vmatpush1.msra.mxu0 %v322
    %770 = vmatprep.subr.mxu0 %v319
    %771 = vmatpush1.msra.mxu0 %v318
    %772 = vmatprep.subr.mxu0 %v315
    %773 = vmatpush1.msra.mxu0 %v314
    %774 = vmatprep.subr.mxu0 %v311
    %775 = vmatpush1.msra.mxu0 %v310
    %776 = vmatprep.subr.mxu0 %v307
    %777 = vmatpush1.msra.mxu0 %v306
    %778 = vmatprep.subr.mxu0 %v303
    %779 = vmatpush1.msra.mxu0 %v302
    %780 = vmatprep.subr.mxu0 %v299
    %781 = vmatpush1.msra.mxu0 %v298
    %782 = vmatprep.subr.mxu0 %v295
    %783 = vmatpush1.msra.mxu0 %v294
    %784 = vmatprep.subr.mxu0 %v291
    %785 = vmatpush1.msra.mxu0 %v290
    %786 = vmatprep.subr.mxu0 %v415
    %787 = vmatpush2.msra.mxu0 %v414
    %788 = vmatprep.subr.mxu0 %v411
    %789 = vmatpush2.msra.mxu0 %v410
    %790 = vmatprep.subr.mxu0 %v407
    %791 = vmatpush2.msra.mxu0 %v406
    %792 = vmatprep.subr.mxu0 %v403
    %793 = vmatpush2.msra.mxu0 %v402
    %794 = vmatprep.subr.mxu0 %v399
    %795 = vmatpush2.msra.mxu0 %v398
    %796 = vmatprep.subr.mxu0 %v395
    %797 = vmatpush2.msra.mxu0 %v394
    %798 = vmatprep.subr.mxu0 %v391
    %799 = vmatpush2.msra.mxu0 %v390
    %800 = vmatprep.subr.mxu0 %v387
    %801 = vmatpush2.msra.mxu0 %v386
    %802 = vmatprep.subr.mxu0 %v383
    %803 = vmatpush2.msra.mxu0 %v382
    %804 = vmatprep.subr.mxu0 %v379
    %805 = vmatpush2.msra.mxu0 %v378
    %806 = vmatprep.subr.mxu0 %v375
    %807 = vmatpush2.msra.mxu0 %v374
    %808 = vmatprep.subr.mxu0 %v371
    %809 = vmatpush2.msra.mxu0 %v370
    %810 = vmatprep.subr.mxu0 %v367
    %811 = vmatpush2.msra.mxu0 %v366
    %812 = vmatprep.subr.mxu0 %v363
    %813 = vmatpush2.msra.mxu0 %v362
    %814 = vmatprep.subr.mxu0 %v359
    %815 = vmatpush2.msra.mxu0 %v358
    %816 = vmatprep.subr.mxu0 %v355
    %817 = vmatpush2.msra.mxu0 %v354
    %818 = vmatprep.mubr.f32.mxu0 %v602
    %819 = vmatmul.mubr.f32.gmra.mxu0 %v594
    %v820 = vpop.f32.mrf.mxu0
    %v821 = vadd.f32 %v750, %v820
    %v822 = vpop.f32.mrf.mxu0
    %v823 = vadd.f32 %v752, %v822
    %824 = vdwg.mxu0
    %825 = vmatprep.subr.mxu0 %v479
    %826 = vmatpush1.msra.mxu0 %v478
    %827 = vmatprep.subr.mxu0 %v475
    %828 = vmatpush1.msra.mxu0 %v474
    %829 = vmatprep.subr.mxu0 %v471
    %830 = vmatpush1.msra.mxu0 %v470
    %831 = vmatprep.subr.mxu0 %v467
    %832 = vmatpush1.msra.mxu0 %v466
    %833 = vmatprep.subr.mxu0 %v463
    %834 = vmatpush1.msra.mxu0 %v462
    %835 = vmatprep.subr.mxu0 %v459
    %836 = vmatpush1.msra.mxu0 %v458
    %837 = vmatprep.subr.mxu0 %v455
    %838 = vmatpush1.msra.mxu0 %v454
    %839 = vmatprep.subr.mxu0 %v451
    %840 = vmatpush1.msra.mxu0 %v450
    %841 = vmatprep.subr.mxu0 %v447
    %842 = vmatpush1.msra.mxu0 %v446
    %843 = vmatprep.subr.mxu0 %v443
    %844 = vmatpush1.msra.mxu0 %v442
    %845 = vmatprep.subr.mxu0 %v439
    %846 = vmatpush1.msra.mxu0 %v438
    %847 = vmatprep.subr.mxu0 %v435
    %848 = vmatpush1.msra.mxu0 %v434
    %849 = vmatprep.subr.mxu0 %v431
    %850 = vmatpush1.msra.mxu0 %v430
    %851 = vmatprep.subr.mxu0 %v427
    %852 = vmatpush1.msra.mxu0 %v426
    %853 = vmatprep.subr.mxu0 %v423
    %854 = vmatpush1.msra.mxu0 %v422
    %855 = vmatprep.subr.mxu0 %v419
    %856 = vmatpush1.msra.mxu0 %v418
    %857 = vmatprep.subr.mxu0 %v543
    %858 = vmatpush2.msra.mxu0 %v542
    %859 = vmatprep.subr.mxu0 %v539
    %860 = vmatpush2.msra.mxu0 %v538
    %861 = vmatprep.subr.mxu0 %v535
    %862 = vmatpush2.msra.mxu0 %v534
    %863 = vmatprep.subr.mxu0 %v531
    %864 = vmatpush2.msra.mxu0 %v530
    %865 = vmatprep.subr.mxu0 %v527
    %866 = vmatpush2.msra.mxu0 %v526
    %867 = vmatprep.subr.mxu0 %v523
    %868 = vmatpush2.msra.mxu0 %v522
    %869 = vmatprep.subr.mxu0 %v519
    %870 = vmatpush2.msra.mxu0 %v518
    %871 = vmatprep.subr.mxu0 %v515
    %872 = vmatpush2.msra.mxu0 %v514
    %873 = vmatprep.subr.mxu0 %v511
    %874 = vmatpush2.msra.mxu0 %v510
    %875 = vmatprep.subr.mxu0 %v507
    %876 = vmatpush2.msra.mxu0 %v506
    %877 = vmatprep.subr.mxu0 %v503
    %878 = vmatpush2.msra.mxu0 %v502
    %879 = vmatprep.subr.mxu0 %v499
    %880 = vmatpush2.msra.mxu0 %v498
    %881 = vmatprep.subr.mxu0 %v495
    %882 = vmatpush2.msra.mxu0 %v494
    %883 = vmatprep.subr.mxu0 %v491
    %884 = vmatpush2.msra.mxu0 %v490
    %885 = vmatprep.subr.mxu0 %v487
    %886 = vmatpush2.msra.mxu0 %v486
    %887 = vmatprep.subr.mxu0 %v483
    %888 = vmatpush2.msra.mxu0 %v482
    %889 = vmatprep.mubr.f32.mxu0 %v603
    %890 = vmatmul.mubr.f32.gmra.mxu0 %v601
    %v891 = vpop.f32.mrf.mxu0
    %v892 = vadd.f32 %v821, %v891
    %v893 = vpop.f32.mrf.mxu0
    %v894 = vadd.f32 %v823, %v893
    %895 = vdwg.mxu0
    %896 = vmatprep.subr.mxu0 %v97
    %897 = vmatpush1.msra.mxu0 %v96
    %898 = vmatprep.subr.mxu0 %v93
    %899 = vmatpush1.msra.mxu0 %v92
    %900 = vmatprep.subr.mxu0 %v89
    %901 = vmatpush1.msra.mxu0 %v88
    %902 = vmatprep.subr.mxu0 %v85
    %903 = vmatpush1.msra.mxu0 %v84
    %904 = vmatprep.subr.mxu0 %v81
    %905 = vmatpush1.msra.mxu0 %v80
    %906 = vmatprep.subr.mxu0 %v77
    %907 = vmatpush1.msra.mxu0 %v76
    %908 = vmatprep.subr.mxu0 %v73
    %909 = vmatpush1.msra.mxu0 %v72
    %910 = vmatprep.subr.mxu0 %v69
    %911 = vmatpush1.msra.mxu0 %v68
    %912 = vmatprep.subr.mxu0 %v65
    %913 = vmatpush1.msra.mxu0 %v64
    %914 = vmatprep.subr.mxu0 %v61
    %915 = vmatpush1.msra.mxu0 %v60
    %916 = vmatprep.subr.mxu0 %v57
    %917 = vmatpush1.msra.mxu0 %v56
    %918 = vmatprep.subr.mxu0 %v53
    %919 = vmatpush1.msra.mxu0 %v52
    %920 = vmatprep.subr.mxu0 %v49
    %921 = vmatpush1.msra.mxu0 %v48
    %922 = vmatprep.subr.mxu0 %v45
    %923 = vmatpush1.msra.mxu0 %v44
    %924 = vmatprep.subr.mxu0 %v41
    %925 = vmatpush1.msra.mxu0 %v40
    %926 = vmatprep.subr.mxu0 %v37
    %927 = vmatpush1.msra.mxu0 %v36
    %928 = vmatprep.subr.mxu0 %v161
    %929 = vmatpush2.msra.mxu0 %v160
    %930 = vmatprep.subr.mxu0 %v157
    %931 = vmatpush2.msra.mxu0 %v156
    %932 = vmatprep.subr.mxu0 %v153
    %933 = vmatpush2.msra.mxu0 %v152
    %934 = vmatprep.subr.mxu0 %v149
    %935 = vmatpush2.msra.mxu0 %v148
    %936 = vmatprep.subr.mxu0 %v145
    %937 = vmatpush2.msra.mxu0 %v144
    %938 = vmatprep.subr.mxu0 %v141
    %939 = vmatpush2.msra.mxu0 %v140
    %940 = vmatprep.subr.mxu0 %v137
    %941 = vmatpush2.msra.mxu0 %v136
    %942 = vmatprep.subr.mxu0 %v133
    %943 = vmatpush2.msra.mxu0 %v132
    %944 = vmatprep.subr.mxu0 %v129
    %945 = vmatpush2.msra.mxu0 %v128
    %946 = vmatprep.subr.mxu0 %v125
    %947 = vmatpush2.msra.mxu0 %v124
    %948 = vmatprep.subr.mxu0 %v121
    %949 = vmatpush2.msra.mxu0 %v120
    %950 = vmatprep.subr.mxu0 %v117
    %951 = vmatpush2.msra.mxu0 %v116
    %952 = vmatprep.subr.mxu0 %v113
    %953 = vmatpush2.msra.mxu0 %v112
    %954 = vmatprep.subr.mxu0 %v109
    %955 = vmatpush2.msra.mxu0 %v108
    %956 = vmatprep.subr.mxu0 %v105
    %957 = vmatpush2.msra.mxu0 %v104
    %958 = vmatprep.subr.mxu0 %v101
    %959 = vmatpush2.msra.mxu0 %v100
    %960 = vmatprep.mubr.f32.mxu0 %v585
    %961 = vmatmul.mubr.f32.gmra.mxu0 %v577
    %v962 = vpop.f32.mrf.mxu0
    %v963 = vadd.f32 %v559, %v962
    %v964 = vpop.f32.mrf.mxu0
    %v965 = vadd.f32 %v563, %v964
    %966 = vdwg.mxu0
    %967 = vmatprep.subr.mxu0 %v225
    %968 = vmatpush1.msra.mxu0 %v224
    %969 = vmatprep.subr.mxu0 %v221
    %970 = vmatpush1.msra.mxu0 %v220
    %971 = vmatprep.subr.mxu0 %v217
    %972 = vmatpush1.msra.mxu0 %v216
    %973 = vmatprep.subr.mxu0 %v213
    %974 = vmatpush1.msra.mxu0 %v212
    %975 = vmatprep.subr.mxu0 %v209
    %976 = vmatpush1.msra.mxu0 %v208
    %977 = vmatprep.subr.mxu0 %v205
    %978 = vmatpush1.msra.mxu0 %v204
    %979 = vmatprep.subr.mxu0 %v201
    %980 = vmatpush1.msra.mxu0 %v200
    %981 = vmatprep.subr.mxu0 %v197
    %982 = vmatpush1.msra.mxu0 %v196
    %983 = vmatprep.subr.mxu0 %v193
    %984 = vmatpush1.msra.mxu0 %v192
    %985 = vmatprep.subr.mxu0 %v189
    %986 = vmatpush1.msra.mxu0 %v188
    %987 = vmatprep.subr.mxu0 %v185
    %988 = vmatpush1.msra.mxu0 %v184
    %989 = vmatprep.subr.mxu0 %v181
    %990 = vmatpush1.msra.mxu0 %v180
    %991 = vmatprep.subr.mxu0 %v177
    %992 = vmatpush1.msra.mxu0 %v176
    %993 = vmatprep.subr.mxu0 %v173
    %994 = vmatpush1.msra.mxu0 %v172
    %995 = vmatprep.subr.mxu0 %v169
    %996 = vmatpush1.msra.mxu0 %v168
    %997 = vmatprep.subr.mxu0 %v165
    %998 = vmatpush1.msra.mxu0 %v164
    %999 = vmatprep.subr.mxu0 %v289
    %1000 = vmatpush2.msra.mxu0 %v288
    %1001 = vmatprep.subr.mxu0 %v285
    %1002 = vmatpush2.msra.mxu0 %v284
    %1003 = vmatprep.subr.mxu0 %v281
    %1004 = vmatpush2.msra.mxu0 %v280
    %1005 = vmatprep.subr.mxu0 %v277
    %1006 = vmatpush2.msra.mxu0 %v276
    %1007 = vmatprep.subr.mxu0 %v273
    %1008 = vmatpush2.msra.mxu0 %v272
    %1009 = vmatprep.subr.mxu0 %v269
    %1010 = vmatpush2.msra.mxu0 %v268
    %1011 = vmatprep.subr.mxu0 %v265
    %1012 = vmatpush2.msra.mxu0 %v264
    %1013 = vmatprep.subr.mxu0 %v261
    %1014 = vmatpush2.msra.mxu0 %v260
    %1015 = vmatprep.subr.mxu0 %v257
    %1016 = vmatpush2.msra.mxu0 %v256
    %1017 = vmatprep.subr.mxu0 %v253
    %1018 = vmatpush2.msra.mxu0 %v252
    %1019 = vmatprep.subr.mxu0 %v249
    %1020 = vmatpush2.msra.mxu0 %v248
    %1021 = vmatprep.subr.mxu0 %v245
    %1022 = vmatpush2.msra.mxu0 %v244
    %1023 = vmatprep.subr.mxu0 %v241
    %1024 = vmatpush2.msra.mxu0 %v240
    %1025 = vmatprep.subr.mxu0 %v237
    %1026 = vmatpush2.msra.mxu0 %v236
    %1027 = vmatprep.subr.mxu0 %v233
    %1028 = vmatpush2.msra.mxu0 %v232
    %1029 = vmatprep.subr.mxu0 %v229
    %1030 = vmatpush2.msra.mxu0 %v228
    %1031 = vmatprep.mubr.f32.mxu0 %v586
    %1032 = vmatmul.mubr.f32.gmra.mxu0 %v584
    %v1033 = vpop.f32.mrf.mxu0
    %v1034 = vadd.f32 %v963, %v1033
    %v1035 = vpop.f32.mrf.mxu0
    %v1036 = vadd.f32 %v965, %v1035
    %1037 = vdwg.mxu0
    %1038 = vmatprep.subr.mxu0 %v353
    %1039 = vmatpush1.msra.mxu0 %v352
    %1040 = vmatprep.subr.mxu0 %v349
    %1041 = vmatpush1.msra.mxu0 %v348
    %1042 = vmatprep.subr.mxu0 %v345
    %1043 = vmatpush1.msra.mxu0 %v344
    %1044 = vmatprep.subr.mxu0 %v341
    %1045 = vmatpush1.msra.mxu0 %v340
    %1046 = vmatprep.subr.mxu0 %v337
    %1047 = vmatpush1.msra.mxu0 %v336
    %1048 = vmatprep.subr.mxu0 %v333
    %1049 = vmatpush1.msra.mxu0 %v332
    %1050 = vmatprep.subr.mxu0 %v329
    %1051 = vmatpush1.msra.mxu0 %v328
    %1052 = vmatprep.subr.mxu0 %v325
    %1053 = vmatpush1.msra.mxu0 %v324
    %1054 = vmatprep.subr.mxu0 %v321
    %1055 = vmatpush1.msra.mxu0 %v320
    %1056 = vmatprep.subr.mxu0 %v317
    %1057 = vmatpush1.msra.mxu0 %v316
    %1058 = vmatprep.subr.mxu0 %v313
    %1059 = vmatpush1.msra.mxu0 %v312
    %1060 = vmatprep.subr.mxu0 %v309
    %1061 = vmatpush1.msra.mxu0 %v308
    %1062 = vmatprep.subr.mxu0 %v305
    %1063 = vmatpush1.msra.mxu0 %v304
    %1064 = vmatprep.subr.mxu0 %v301
    %1065 = vmatpush1.msra.mxu0 %v300
    %1066 = vmatprep.subr.mxu0 %v297
    %1067 = vmatpush1.msra.mxu0 %v296
    %1068 = vmatprep.subr.mxu0 %v293
    %1069 = vmatpush1.msra.mxu0 %v292
    %1070 = vmatprep.subr.mxu0 %v417
    %1071 = vmatpush2.msra.mxu0 %v416
    %1072 = vmatprep.subr.mxu0 %v413
    %1073 = vmatpush2.msra.mxu0 %v412
    %1074 = vmatprep.subr.mxu0 %v409
    %1075 = vmatpush2.msra.mxu0 %v408
    %1076 = vmatprep.subr.mxu0 %v405
    %1077 = vmatpush2.msra.mxu0 %v404
    %1078 = vmatprep.subr.mxu0 %v401
    %1079 = vmatpush2.msra.mxu0 %v400
    %1080 = vmatprep.subr.mxu0 %v397
    %1081 = vmatpush2.msra.mxu0 %v396
    %1082 = vmatprep.subr.mxu0 %v393
    %1083 = vmatpush2.msra.mxu0 %v392
    %1084 = vmatprep.subr.mxu0 %v389
    %1085 = vmatpush2.msra.mxu0 %v388
    %1086 = vmatprep.subr.mxu0 %v385
    %1087 = vmatpush2.msra.mxu0 %v384
    %1088 = vmatprep.subr.mxu0 %v381
    %1089 = vmatpush2.msra.mxu0 %v380
    %1090 = vmatprep.subr.mxu0 %v377
    %1091 = vmatpush2.msra.mxu0 %v376
    %1092 = vmatprep.subr.mxu0 %v373
    %1093 = vmatpush2.msra.mxu0 %v372
    %1094 = vmatprep.subr.mxu0 %v369
    %1095 = vmatpush2.msra.mxu0 %v368
    %1096 = vmatprep.subr.mxu0 %v365
    %1097 = vmatpush2.msra.mxu0 %v364
    %1098 = vmatprep.subr.mxu0 %v361
    %1099 = vmatpush2.msra.mxu0 %v360
    %1100 = vmatprep.subr.mxu0 %v357
    %1101 = vmatpush2.msra.mxu0 %v356
    %1102 = vmatprep.mubr.f32.mxu0 %v602
    %1103 = vmatmul.mubr.f32.gmra.mxu0 %v594
    %v1104 = vpop.f32.mrf.mxu0
    %v1105 = vadd.f32 %v1034, %v1104
    %v1106 = vpop.f32.mrf.mxu0
    %v1107 = vadd.f32 %v1036, %v1106
    %1108 = vdwg.mxu0
    %1109 = vmatprep.subr.mxu0 %v481
    %1110 = vmatpush1.msra.mxu0 %v480
    %1111 = vmatprep.subr.mxu0 %v477
    %1112 = vmatpush1.msra.mxu0 %v476
    %1113 = vmatprep.subr.mxu0 %v473
    %1114 = vmatpush1.msra.mxu0 %v472
    %1115 = vmatprep.subr.mxu0 %v469
    %1116 = vmatpush1.msra.mxu0 %v468
    %1117 = vmatprep.subr.mxu0 %v465
    %1118 = vmatpush1.msra.mxu0 %v464
    %1119 = vmatprep.subr.mxu0 %v461
    %1120 = vmatpush1.msra.mxu0 %v460
    %1121 = vmatprep.subr.mxu0 %v457
    %1122 = vmatpush1.msra.mxu0 %v456
    %1123 = vmatprep.subr.mxu0 %v453
    %1124 = vmatpush1.msra.mxu0 %v452
    %1125 = vmatprep.subr.mxu0 %v449
    %1126 = vmatpush1.msra.mxu0 %v448
    %1127 = vmatprep.subr.mxu0 %v445
    %1128 = vmatpush1.msra.mxu0 %v444
    %1129 = vmatprep.subr.mxu0 %v441
    %1130 = vmatpush1.msra.mxu0 %v440
    %1131 = vmatprep.subr.mxu0 %v437
    %1132 = vmatpush1.msra.mxu0 %v436
    %1133 = vmatprep.subr.mxu0 %v433
    %1134 = vmatpush1.msra.mxu0 %v432
    %1135 = vmatprep.subr.mxu0 %v429
    %1136 = vmatpush1.msra.mxu0 %v428
    %1137 = vmatprep.subr.mxu0 %v425
    %1138 = vmatpush1.msra.mxu0 %v424
    %1139 = vmatprep.subr.mxu0 %v421
    %1140 = vmatpush1.msra.mxu0 %v420
    %1141 = vmatprep.subr.mxu0 %v545
    %1142 = vmatpush2.msra.mxu0 %v544
    %1143 = vmatprep.subr.mxu0 %v541
    %1144 = vmatpush2.msra.mxu0 %v540
    %1145 = vmatprep.subr.mxu0 %v537
    %1146 = vmatpush2.msra.mxu0 %v536
    %1147 = vmatprep.subr.mxu0 %v533
    %1148 = vmatpush2.msra.mxu0 %v532
    %1149 = vmatprep.subr.mxu0 %v529
    %1150 = vmatpush2.msra.mxu0 %v528
    %1151 = vmatprep.subr.mxu0 %v525
    %1152 = vmatpush2.msra.mxu0 %v524
    %1153 = vmatprep.subr.mxu0 %v521
    %1154 = vmatpush2.msra.mxu0 %v520
    %1155 = vmatprep.subr.mxu0 %v517
    %1156 = vmatpush2.msra.mxu0 %v516
    %1157 = vmatprep.subr.mxu0 %v513
    %1158 = vmatpush2.msra.mxu0 %v512
    %1159 = vmatprep.subr.mxu0 %v509
    %1160 = vmatpush2.msra.mxu0 %v508
    %1161 = vmatprep.subr.mxu0 %v505
    %1162 = vmatpush2.msra.mxu0 %v504
    %1163 = vmatprep.subr.mxu0 %v501
    %1164 = vmatpush2.msra.mxu0 %v500
    %1165 = vmatprep.subr.mxu0 %v497
    %1166 = vmatpush2.msra.mxu0 %v496
    %1167 = vmatprep.subr.mxu0 %v493
    %1168 = vmatpush2.msra.mxu0 %v492
    %1169 = vmatprep.subr.mxu0 %v489
    %1170 = vmatpush2.msra.mxu0 %v488
    %1171 = vmatprep.subr.mxu0 %v485
    %1172 = vmatpush2.msra.mxu0 %v484
    %1173 = vmatprep.mubr.f32.mxu0 %v603
    %1174 = vmatmul.mubr.f32.gmra.mxu0 %v601
    %v1175 = vpop.f32.mrf.mxu0
    %v1176 = vadd.f32 %v1105, %v1175
    %v1177 = vpop.f32.mrf.mxu0
    %v1178 = vadd.f32 %v1107, %v1177
    %1179 = vdwg.mxu0
    %vm1180 = vcmp.gt.f32.partialorder %v892, 0.0
    %vm1181 = vcmp.gt.f32.partialorder %v894, 0.0
    %vm1182 = vcmp.gt.f32.partialorder %v1176, 0.0
    %vm1183 = vcmp.gt.f32.partialorder %v1178, 0.0
    %v1184 = vmin.f32 %v892, 0.0
    %v1185 = vmin.f32 %v894, 0.0
    %v1186 = vmin.f32 %v1176, 0.0
    %v1187 = vmin.f32 %v1178, 0.0
    %v1188 = vmul.f32 %v1184, 1.442695
    %v1189 = vpow.pop %v1188
    %v1190 = vmul.f32 %v1185, 1.442695
    %v1191 = vpow.pop %v1190
    %v1192 = vmul.f32 %v1186, 1.442695
    %v1193 = vpow.pop %v1192
    %v1194 = vmul.f32 %v1187, 1.442695
    %v1195 = vpow.pop %v1194
    %v1196 = vsub.f32 %v1189, 1.0
    %v1197 = vsub.f32 %v1191, 1.0
    %v1198 = vsub.f32 %v1193, 1.0
    %v1199 = vsub.f32 %v1195, 1.0
    %v1200 = vsel %vm1180, %v892, %v1196
    %v1201 = vsel %vm1181, %v894, %v1197
    %v1202 = vsel %vm1182, %v1176, %v1198
    %v1203 = vsel %vm1183, %v1178, %v1199
    %v1204 = vld [vmem:[%s2] sm:$0xff]
    %v1205 = vld [vmem:[%s2 + $0x8] sm:$0xff]
    %v1206 = vld [vmem:[%s2 + $0x10] sm:$0xff]
    %v1207 = vld [vmem:[%s2 + $0x18] sm:$0xff]
    %v1208 = vld [vmem:[%s2 + $0x20] sm:$0xff]
    %v1209 = vld [vmem:[%s2 + $0x28] sm:$0xff]
    %v1210 = vld [vmem:[%s2 + $0x30] sm:$0xff]
    %v1211 = vld [vmem:[%s2 + $0x38] sm:$0xff]
    %v1212 = vld [vmem:[%s2 + $0x40] sm:$0xff]
    %v1213 = vld [vmem:[%s2 + $0x48] sm:$0xff]
    %v1214 = vld [vmem:[%s2 + $0x50] sm:$0xff]
    %v1215 = vld [vmem:[%s2 + $0x58] sm:$0xff]
    %v1216 = vld [vmem:[%s2 + $0x60] sm:$0xff]
    %v1217 = vld [vmem:[%s2 + $0x68] sm:$0xff]
    %v1218 = vld [vmem:[%s2 + $0x70] sm:$0xff]
    %v1219 = vld [vmem:[%s2 + $0x78] sm:$0xff]
    %v1220 = vld [vmem:[%s2 + $0x80] sm:$0xff]
    %v1221 = vld [vmem:[%s2 + $0x88] sm:$0xff]
    %v1222 = vld [vmem:[%s2 + $0x90] sm:$0xff]
    %v1223 = vld [vmem:[%s2 + $0x98] sm:$0xff]
    %v1224 = vld [vmem:[%s2 + $0xa0] sm:$0xff]
    %v1225 = vld [vmem:[%s2 + $0xa8] sm:$0xff]
    %v1226 = vld [vmem:[%s2 + $0xb0] sm:$0xff]
    %v1227 = vld [vmem:[%s2 + $0xb8] sm:$0xff]
    %v1228 = vld [vmem:[%s2 + $0xc0] sm:$0xff]
    %v1229 = vld [vmem:[%s2 + $0xc8] sm:$0xff]
    %v1230 = vld [vmem:[%s2 + $0xd0] sm:$0xff]
    %v1231 = vld [vmem:[%s2 + $0xd8] sm:$0xff]
    %v1232 = vld [vmem:[%s2 + $0xe0] sm:$0xff]
    %v1233 = vld [vmem:[%s2 + $0xe8] sm:$0xff]
    %v1234 = vld [vmem:[%s2 + $0xf0] sm:$0xff]
    %v1235 = vld [vmem:[%s2 + $0xf8] sm:$0xff]
    %v1236 = vld [vmem:[%s2 + $0x100] sm:$0xff]
    %v1237 = vld [vmem:[%s2 + $0x108] sm:$0xff]
    %v1238 = vld [vmem:[%s2 + $0x110] sm:$0xff]
    %v1239 = vld [vmem:[%s2 + $0x118] sm:$0xff]
    %v1240 = vld [vmem:[%s2 + $0x120] sm:$0xff]
    %v1241 = vld [vmem:[%s2 + $0x128] sm:$0xff]
    %v1242 = vld [vmem:[%s2 + $0x130] sm:$0xff]
    %v1243 = vld [vmem:[%s2 + $0x138] sm:$0xff]
    %v1244 = vld [vmem:[%s2 + $0x140] sm:$0xff]
    %v1245 = vld [vmem:[%s2 + $0x148] sm:$0xff]
    %v1246 = vld [vmem:[%s2 + $0x150] sm:$0xff]
    %v1247 = vld [vmem:[%s2 + $0x158] sm:$0xff]
    %v1248 = vld [vmem:[%s2 + $0x160] sm:$0xff]
    %v1249 = vld [vmem:[%s2 + $0x168] sm:$0xff]
    %v1250 = vld [vmem:[%s2 + $0x170] sm:$0xff]
    %v1251 = vld [vmem:[%s2 + $0x178] sm:$0xff]
    %v1252 = vld [vmem:[%s2 + $0x180] sm:$0xff]
    %v1253 = vld [vmem:[%s2 + $0x188] sm:$0xff]
    %v1254 = vld [vmem:[%s2 + $0x190] sm:$0xff]
    %v1255 = vld [vmem:[%s2 + $0x198] sm:$0xff]
    %v1256 = vld [vmem:[%s2 + $0x1a0] sm:$0xff]
    %v1257 = vld [vmem:[%s2 + $0x1a8] sm:$0xff]
    %v1258 = vld [vmem:[%s2 + $0x1b0] sm:$0xff]
    %v1259 = vld [vmem:[%s2 + $0x1b8] sm:$0xff]
    %v1260 = vld [vmem:[%s2 + $0x1c0] sm:$0xff]
    %v1261 = vld [vmem:[%s2 + $0x1c8] sm:$0xff]
    %v1262 = vld [vmem:[%s2 + $0x1d0] sm:$0xff]
    %v1263 = vld [vmem:[%s2 + $0x1d8] sm:$0xff]
    %v1264 = vld [vmem:[%s2 + $0x1e0] sm:$0xff]
    %v1265 = vld [vmem:[%s2 + $0x1e8] sm:$0xff]
    %v1266 = vld [vmem:[%s2 + $0x1f0] sm:$0xff]
    %v1267 = vld [vmem:[%s2 + $0x1f8] sm:$0xff]
    %v1268 = vld [vmem:[%s2 + $0x200] sm:$0xff]
    %v1269 = vld [vmem:[%s2 + $0x208] sm:$0xff]
    %v1270 = vld [vmem:[%s2 + $0x210] sm:$0xff]
    %v1271 = vld [vmem:[%s2 + $0x218] sm:$0xff]
    %v1272 = vld [vmem:[%s2 + $0x220] sm:$0xff]
    %v1273 = vld [vmem:[%s2 + $0x228] sm:$0xff]
    %v1274 = vld [vmem:[%s2 + $0x230] sm:$0xff]
    %v1275 = vld [vmem:[%s2 + $0x238] sm:$0xff]
    %v1276 = vld [vmem:[%s2 + $0x240] sm:$0xff]
    %v1277 = vld [vmem:[%s2 + $0x248] sm:$0xff]
    %v1278 = vld [vmem:[%s2 + $0x250] sm:$0xff]
    %v1279 = vld [vmem:[%s2 + $0x258] sm:$0xff]
    %v1280 = vld [vmem:[%s2 + $0x260] sm:$0xff]
    %v1281 = vld [vmem:[%s2 + $0x268] sm:$0xff]
    %v1282 = vld [vmem:[%s2 + $0x270] sm:$0xff]
    %v1283 = vld [vmem:[%s2 + $0x278] sm:$0xff]
    %v1284 = vld [vmem:[%s2 + $0x280] sm:$0xff]
    %v1285 = vld [vmem:[%s2 + $0x288] sm:$0xff]
    %v1286 = vld [vmem:[%s2 + $0x290] sm:$0xff]
    %v1287 = vld [vmem:[%s2 + $0x298] sm:$0xff]
    %v1288 = vld [vmem:[%s2 + $0x2a0] sm:$0xff]
    %v1289 = vld [vmem:[%s2 + $0x2a8] sm:$0xff]
    %v1290 = vld [vmem:[%s2 + $0x2b0] sm:$0xff]
    %v1291 = vld [vmem:[%s2 + $0x2b8] sm:$0xff]
    %v1292 = vld [vmem:[%s2 + $0x2c0] sm:$0xff]
    %v1293 = vld [vmem:[%s2 + $0x2c8] sm:$0xff]
    %v1294 = vld [vmem:[%s2 + $0x2d0] sm:$0xff]
    %v1295 = vld [vmem:[%s2 + $0x2d8] sm:$0xff]
    %v1296 = vld [vmem:[%s2 + $0x2e0] sm:$0xff]
    %v1297 = vld [vmem:[%s2 + $0x2e8] sm:$0xff]
    %v1298 = vld [vmem:[%s2 + $0x2f0] sm:$0xff]
    %v1299 = vld [vmem:[%s2 + $0x2f8] sm:$0xff]
    %v1300 = vld [vmem:[%s2 + $0x300] sm:$0xff]
    %v1301 = vld [vmem:[%s2 + $0x308] sm:$0xff]
    %v1302 = vld [vmem:[%s6 + $0x4] sm:$0x3]
    %v1304 = vlaneseq
    %v1305 = vshrl.u32 %v1304, 7
    %v1306 = vsub.s32 0, %v1305
    %v1307 = vrot.slane %v1302, %v1306
    %v1308 = vlaneseq
    %v1309 = vshrl.u32 %v1308, 7
    %v1310 = vsub.s32 1, %v1309
    %v1311 = vrot.slane %v1302, %v1310
    %vm1314 = vcmask 64512
    %v1316 = vsel %vm1314, %v1203, 0
    %1318 = vmatprep.subr.mxu0 %v1235
    %1319 = vmatpush1.msra.mxu0 %v1234
    %1320 = vmatprep.subr.mxu0 %v1233
    %1321 = vmatpush1.msra.mxu0 %v1232
    %1322 = vmatprep.subr.mxu0 %v1231
    %1323 = vmatpush1.msra.mxu0 %v1230
    %1324 = vmatprep.subr.mxu0 %v1229
    %1325 = vmatpush1.msra.mxu0 %v1228
    %1326 = vmatprep.subr.mxu0 %v1227
    %1327 = vmatpush1.msra.mxu0 %v1226
    %1328 = vmatprep.subr.mxu0 %v1225
    %1329 = vmatpush1.msra.mxu0 %v1224
    %1330 = vmatprep.subr.mxu0 %v1223
    %1331 = vmatpush1.msra.mxu0 %v1222
    %1332 = vmatprep.subr.mxu0 %v1221
    %1333 = vmatpush1.msra.mxu0 %v1220
    %1334 = vmatprep.subr.mxu0 %v1219
    %1335 = vmatpush1.msra.mxu0 %v1218
    %1336 = vmatprep.subr.mxu0 %v1217
    %1337 = vmatpush1.msra.mxu0 %v1216
    %1338 = vmatprep.subr.mxu0 %v1215
    %1339 = vmatpush1.msra.mxu0 %v1214
    %1340 = vmatprep.subr.mxu0 %v1213
    %1341 = vmatpush1.msra.mxu0 %v1212
    %1342 = vmatprep.subr.mxu0 %v1211
    %1343 = vmatpush1.msra.mxu0 %v1210
    %1344 = vmatprep.subr.mxu0 %v1209
    %1345 = vmatpush1.msra.mxu0 %v1208
    %1346 = vmatprep.subr.mxu0 %v1207
    %1347 = vmatpush1.msra.mxu0 %v1206
    %1348 = vmatprep.subr.mxu0 %v1205
    %1349 = vmatpush1.msra.mxu0 %v1204
    %1350 = vmatprep.subr.mxu0 %v1267
    %1351 = vmatpush2.msra.mxu0 %v1266
    %1352 = vmatprep.subr.mxu0 %v1265
    %1353 = vmatpush2.msra.mxu0 %v1264
    %1354 = vmatprep.subr.mxu0 %v1263
    %1355 = vmatpush2.msra.mxu0 %v1262
    %1356 = vmatprep.subr.mxu0 %v1261
    %1357 = vmatpush2.msra.mxu0 %v1260
    %1358 = vmatprep.subr.mxu0 %v1259
    %1359 = vmatpush2.msra.mxu0 %v1258
    %1360 = vmatprep.subr.mxu0 %v1257
    %1361 = vmatpush2.msra.mxu0 %v1256
    %1362 = vmatprep.subr.mxu0 %v1255
    %1363 = vmatpush2.msra.mxu0 %v1254
    %1364 = vmatprep.subr.mxu0 %v1253
    %1365 = vmatpush2.msra.mxu0 %v1252
    %1366 = vmatprep.subr.mxu0 %v1251
    %1367 = vmatpush2.msra.mxu0 %v1250
    %1368 = vmatprep.subr.mxu0 %v1249
    %1369 = vmatpush2.msra.mxu0 %v1248
    %1370 = vmatprep.subr.mxu0 %v1247
    %1371 = vmatpush2.msra.mxu0 %v1246
    %1372 = vmatprep.subr.mxu0 %v1245
    %1373 = vmatpush2.msra.mxu0 %v1244
    %1374 = vmatprep.subr.mxu0 %v1243
    %1375 = vmatpush2.msra.mxu0 %v1242
    %1376 = vmatprep.subr.mxu0 %v1241
    %1377 = vmatpush2.msra.mxu0 %v1240
    %1378 = vmatprep.subr.mxu0 %v1239
    %1379 = vmatpush2.msra.mxu0 %v1238
    %1380 = vmatprep.subr.mxu0 %v1237
    %1381 = vmatpush2.msra.mxu0 %v1236
    %1382 = vmatprep.mubr.f32.mxu0 %v1201
    %1383 = vmatmul.mubr.f32.gmra.mxu0 %v1200
    %v1384 = vpop.f32.mrf.mxu0
    %v1385 = vadd.f32 %v1307, %v1384
    %v1386 = vpop.f32.mrf.mxu0
    %v1387 = vadd.f32 %v1311, %v1386
    %1388 = vdwg.mxu0
    %1389 = vmatprep.subr.mxu0 %v1299
    %1390 = vmatpush1.msra.mxu0 %v1298
    %1391 = vmatprep.subr.mxu0 %v1297
    %1392 = vmatpush1.msra.mxu0 %v1296
    %1393 = vmatprep.subr.mxu0 %v1295
    %1394 = vmatpush1.msra.mxu0 %v1294
    %1395 = vmatprep.subr.mxu0 %v1293
    %1396 = vmatpush1.msra.mxu0 %v1292
    %1397 = vmatprep.subr.mxu0 %v1291
    %1398 = vmatpush1.msra.mxu0 %v1290
    %1399 = vmatprep.subr.mxu0 %v1289
    %1400 = vmatpush1.msra.mxu0 %v1288
    %1401 = vmatprep.subr.mxu0 %v1287
    %1402 = vmatpush1.msra.mxu0 %v1286
    %1403 = vmatprep.subr.mxu0 %v1285
    %1404 = vmatpush1.msra.mxu0 %v1284
    %1405 = vmatprep.subr.mxu0 %v1283
    %1406 = vmatpush1.msra.mxu0 %v1282
    %1407 = vmatprep.subr.mxu0 %v1281
    %1408 = vmatpush1.msra.mxu0 %v1280
    %1409 = vmatprep.subr.mxu0 %v1279
    %1410 = vmatpush1.msra.mxu0 %v1278
    %1411 = vmatprep.subr.mxu0 %v1277
    %1412 = vmatpush1.msra.mxu0 %v1276
    %1413 = vmatprep.subr.mxu0 %v1275
    %1414 = vmatpush1.msra.mxu0 %v1274
    %1415 = vmatprep.subr.mxu0 %v1273
    %1416 = vmatpush1.msra.mxu0 %v1272
    %1417 = vmatprep.subr.mxu0 %v1271
    %1418 = vmatpush1.msra.mxu0 %v1270
    %1419 = vmatprep.subr.mxu0 %v1269
    %1420 = vmatpush1.msra.mxu0 %v1268
    %1421 = vmatprep.subr.mxu0 0.0
    %1422 = vmatpush2.msra.mxu0 0.0
    %1423 = vmatprep.subr.mxu0 0.0
    %1424 = vmatpush2.msra.mxu0 0.0
    %1425 = vmatprep.subr.mxu0 0.0
    %1426 = vmatpush2.msra.mxu0 0.0
    %1427 = vmatprep.subr.mxu0 0.0
    %1428 = vmatpush2.msra.mxu0 0.0
    %1429 = vmatprep.subr.mxu0 0.0
    %1430 = vmatpush2.msra.mxu0 0.0
    %1431 = vmatprep.subr.mxu0 0.0
    %1432 = vmatpush2.msra.mxu0 0.0
    %1433 = vmatprep.subr.mxu0 0.0
    %1434 = vmatpush2.msra.mxu0 0.0
    %1435 = vmatprep.subr.mxu0 0.0
    %1436 = vmatpush2.msra.mxu0 0.0
    %1437 = vmatprep.subr.mxu0 0.0
    %1438 = vmatpush2.msra.mxu0 0.0
    %1439 = vmatprep.subr.mxu0 0.0
    %1440 = vmatpush2.msra.mxu0 0.0
    %1441 = vmatprep.subr.mxu0 0.0
    %1442 = vmatpush2.msra.mxu0 0.0
    %1443 = vmatprep.subr.mxu0 0.0
    %1444 = vmatpush2.msra.mxu0 0.0
    %1445 = vmatprep.subr.mxu0 0.0
    %1446 = vmatpush2.msra.mxu0 0.0
    %1447 = vmatprep.subr.mxu0 0.0
    %1448 = vmatpush2.msra.mxu0 0.0
    %1449 = vmatprep.subr.mxu0 0.0
    %1450 = vmatpush2.msra.mxu0 0.0
    %1451 = vmatprep.subr.mxu0 %v1301
    %1452 = vmatpush2.msra.mxu0 %v1300
    %1453 = vmatprep.mubr.f32.mxu0 %v1316
    %1454 = vmatmul.mubr.f32.gmra.mxu0 %v1202
    %v1455 = vpop.f32.mrf.mxu0
    %v1456 = vadd.f32 %v1385, %v1455
    %v1457 = vpop.f32.mrf.mxu0
    %v1458 = vadd.f32 %v1387, %v1457
    %1459 = vdwg.mxu0
    %vm1460 = vcmp.gt.f32.partialorder %v1456, 0.0
    %vm1461 = vcmp.gt.f32.partialorder %v1458, 0.0
    %v1462 = vmin.f32 %v1456, 0.0
    %v1463 = vmin.f32 %v1458, 0.0
    %v1464 = vmul.f32 %v1462, 1.442695
    %v1465 = vpow.pop %v1464
    %v1466 = vmul.f32 %v1463, 1.442695
    %v1467 = vpow.pop %v1466
    %v1468 = vsub.f32 %v1465, 1.0
    %v1469 = vsub.f32 %v1467, 1.0
    %v1470 = vsel %vm1460, %v1456, %v1468
    %v1471 = vsel %vm1461, %v1458, %v1469
    %v1472 = vld [vmem:[%s3] sm:$0xff]
    %v1473 = vld [vmem:[%s3 + $0x8] sm:$0xff]
    %v1474 = vld [vmem:[%s3 + $0x10] sm:$0xff]
    %v1475 = vld [vmem:[%s3 + $0x18] sm:$0xff]
    %v1476 = vld [vmem:[%s3 + $0x20] sm:$0xff]
    %v1477 = vld [vmem:[%s3 + $0x28] sm:$0xff]
    %v1478 = vld [vmem:[%s3 + $0x30] sm:$0xff]
    %v1479 = vld [vmem:[%s3 + $0x38] sm:$0xff]
    %v1480 = vld [vmem:[%s3 + $0x40] sm:$0xff]
    %v1481 = vld [vmem:[%s3 + $0x48] sm:$0xff]
    %v1482 = vld [vmem:[%s3 + $0x50] sm:$0xff]
    %v1483 = vld [vmem:[%s3 + $0x58] sm:$0xff]
    %v1484 = vld [vmem:[%s3 + $0x60] sm:$0xff]
    %v1485 = vld [vmem:[%s3 + $0x68] sm:$0xff]
    %v1486 = vld [vmem:[%s3 + $0x70] sm:$0xff]
    %v1487 = vld [vmem:[%s3 + $0x78] sm:$0xff]
    %v1488 = vld [vmem:[%s3 + $0x80] sm:$0xff]
    %v1489 = vld [vmem:[%s3 + $0x88] sm:$0xff]
    %v1490 = vld [vmem:[%s6 + $0x6] sm:$0x1]
    %v1492 = vlaneseq
    %v1493 = vshrl.u32 %v1492, 7
    %v1494 = vsub.s32 0, %v1493
    %v1495 = vrot.slane %v1490, %v1494
    %vm1497 = vcmask 130048
    %v1499 = vsel %vm1497, %v1471, 0
    %1501 = vmatprep.subr.mxu0 0.0
    %1502 = vmatpush1.msra.mxu0 %v1487
    %1503 = vmatprep.subr.mxu0 0.0
    %1504 = vmatpush1.msra.mxu0 %v1486
    %1505 = vmatprep.subr.mxu0 0.0
    %1506 = vmatpush1.msra.mxu0 %v1485
    %1507 = vmatprep.subr.mxu0 0.0
    %1508 = vmatpush1.msra.mxu0 %v1484
    %1509 = vmatprep.subr.mxu0 0.0
    %1510 = vmatpush1.msra.mxu0 %v1483
    %1511 = vmatprep.subr.mxu0 0.0
    %1512 = vmatpush1.msra.mxu0 %v1482
    %1513 = vmatprep.subr.mxu0 0.0
    %1514 = vmatpush1.msra.mxu0 %v1481
    %1515 = vmatprep.subr.mxu0 0.0
    %1516 = vmatpush1.msra.mxu0 %v1480
    %1517 = vmatprep.subr.mxu0 0.0
    %1518 = vmatpush1.msra.mxu0 %v1479
    %1519 = vmatprep.subr.mxu0 0.0
    %1520 = vmatpush1.msra.mxu0 %v1478
    %1521 = vmatprep.subr.mxu0 0.0
    %1522 = vmatpush1.msra.mxu0 %v1477
    %1523 = vmatprep.subr.mxu0 0.0
    %1524 = vmatpush1.msra.mxu0 %v1476
    %1525 = vmatprep.subr.mxu0 0.0
    %1526 = vmatpush1.msra.mxu0 %v1475
    %1527 = vmatprep.subr.mxu0 0.0
    %1528 = vmatpush1.msra.mxu0 %v1474
    %1529 = vmatprep.subr.mxu0 0.0
    %1530 = vmatpush1.msra.mxu0 %v1473
    %1531 = vmatprep.subr.mxu0 0.0
    %1532 = vmatpush1.msra.mxu0 %v1472
    %1533 = vmatprep.subr.mxu0 0.0
    %1534 = vmatpush2.msra.mxu0 0.0
    %1535 = vmatprep.subr.mxu0 0.0
    %1536 = vmatpush2.msra.mxu0 0.0
    %1537 = vmatprep.subr.mxu0 0.0
    %1538 = vmatpush2.msra.mxu0 0.0
    %1539 = vmatprep.subr.mxu0 0.0
    %1540 = vmatpush2.msra.mxu0 0.0
    %1541 = vmatprep.subr.mxu0 0.0
    %1542 = vmatpush2.msra.mxu0 0.0
    %1543 = vmatprep.subr.mxu0 0.0
    %1544 = vmatpush2.msra.mxu0 0.0
    %1545 = vmatprep.subr.mxu0 0.0
    %1546 = vmatpush2.msra.mxu0 0.0
    %1547 = vmatprep.subr.mxu0 0.0
    %1548 = vmatpush2.msra.mxu0 0.0
    %1549 = vmatprep.subr.mxu0 0.0
    %1550 = vmatpush2.msra.mxu0 0.0
    %1551 = vmatprep.subr.mxu0 0.0
    %1552 = vmatpush2.msra.mxu0 0.0
    %1553 = vmatprep.subr.mxu0 0.0
    %1554 = vmatpush2.msra.mxu0 0.0
    %1555 = vmatprep.subr.mxu0 0.0
    %1556 = vmatpush2.msra.mxu0 0.0
    %1557 = vmatprep.subr.mxu0 0.0
    %1558 = vmatpush2.msra.mxu0 0.0
    %1559 = vmatprep.subr.mxu0 0.0
    %1560 = vmatpush2.msra.mxu0 0.0
    %1561 = vmatprep.subr.mxu0 0.0
    %1562 = vmatpush2.msra.mxu0 %v1489
    %1563 = vmatprep.subr.mxu0 0.0
    %1564 = vmatpush2.msra.mxu0 %v1488
    %1565 = vmatprep.mubr.f32.mxu0 %v1499
    %1566 = vmatmul.mubr.f32.gmra.mxu0 %v1470
    %v1567 = vpop.f32.mrf.mxu0
    %v1568 = vadd.f32 %v1495, %v1567
    %v1569 = vpop.f32.mrf.mxu0
    %1570 = vdwg.mxu0
    %vm1571 = vcmp.gt.f32.partialorder %v1568, 0.0
    %v1572 = vmin.f32 %v1568, 0.0
    %v1573 = vmul.f32 %v1572, 1.442695
    %v1574 = vpow.pop %v1573
    %v1575 = vsub.f32 %v1574, 1.0
    %v1576 = vsel %vm1571, %v1568, %v1575
    %v1577 = vld [vmem:[%s4] sm:$0xff]
    %v1578 = vld [vmem:[%s4 + $0x8] sm:$0xff]
    %v1579 = vld [vmem:[%s4 + $0x10] sm:$0xff]
    %v1580 = vld [vmem:[%s4 + $0x18] sm:$0xff]
    %v1581 = vld [vmem:[%s6 + $0x7] sm:$0x1]
    %v1583 = vlaneseq
    %v1584 = vshrl.u32 %v1583, 7
    %v1585 = vsub.s32 0, %v1584
    %v1586 = vrot.slane %v1581, %v1585
    %vm1588 = vcmask 261120
    %v1590 = vsel %vm1588, %v1576, 0
    %1592 = vmatprep.subr.mxu0 0.0
    %1593 = vmatpush1.msra.mxu0 0.0
    %1594 = vmatprep.subr.mxu0 0.0
    %1595 = vmatpush1.msra.mxu0 0.0
    %1596 = vmatprep.subr.mxu0 0.0
    %1597 = vmatpush1.msra.mxu0 0.0
    %1598 = vmatprep.subr.mxu0 0.0
    %1599 = vmatpush1.msra.mxu0 0.0
    %1600 = vmatprep.subr.mxu0 0.0
    %1601 = vmatpush1.msra.mxu0 0.0
    %1602 = vmatprep.subr.mxu0 0.0
    %1603 = vmatpush1.msra.mxu0 0.0
    %1604 = vmatprep.subr.mxu0 0.0
    %1605 = vmatpush1.msra.mxu0 0.0
    %1606 = vmatprep.subr.mxu0 0.0
    %1607 = vmatpush1.msra.mxu0 0.0
    %1608 = vmatprep.subr.mxu0 0.0
    %1609 = vmatpush1.msra.mxu0 0.0
    %1610 = vmatprep.subr.mxu0 0.0
    %1611 = vmatpush1.msra.mxu0 0.0
    %1612 = vmatprep.subr.mxu0 0.0
    %1613 = vmatpush1.msra.mxu0 0.0
    %1614 = vmatprep.subr.mxu0 0.0
    %1615 = vmatpush1.msra.mxu0 0.0
    %1616 = vmatprep.subr.mxu0 0.0
    %1617 = vmatpush1.msra.mxu0 %v1580
    %1618 = vmatprep.subr.mxu0 0.0
    %1619 = vmatpush1.msra.mxu0 %v1579
    %1620 = vmatprep.subr.mxu0 0.0
    %1621 = vmatpush1.msra.mxu0 %v1578
    %1622 = vmatprep.subr.mxu0 0.0
    %1623 = vmatpush1.msra.mxu0 %v1577
    %1624 = vmatprep.subr.mxu0 0.0
    %1625 = vmatpush2.msra.mxu0 0.0
    %1626 = vmatprep.subr.mxu0 0.0
    %1627 = vmatpush2.msra.mxu0 0.0
    %1628 = vmatprep.subr.mxu0 0.0
    %1629 = vmatpush2.msra.mxu0 0.0
    %1630 = vmatprep.subr.mxu0 0.0
    %1631 = vmatpush2.msra.mxu0 0.0
    %1632 = vmatprep.subr.mxu0 0.0
    %1633 = vmatpush2.msra.mxu0 0.0
    %1634 = vmatprep.subr.mxu0 0.0
    %1635 = vmatpush2.msra.mxu0 0.0
    %1636 = vmatprep.subr.mxu0 0.0
    %1637 = vmatpush2.msra.mxu0 0.0
    %1638 = vmatprep.subr.mxu0 0.0
    %1639 = vmatpush2.msra.mxu0 0.0
    %1640 = vmatprep.subr.mxu0 0.0
    %1641 = vmatpush2.msra.mxu0 0.0
    %1642 = vmatprep.subr.mxu0 0.0
    %1643 = vmatpush2.msra.mxu0 0.0
    %1644 = vmatprep.subr.mxu0 0.0
    %1645 = vmatpush2.msra.mxu0 0.0
    %1646 = vmatprep.subr.mxu0 0.0
    %1647 = vmatpush2.msra.mxu0 0.0
    %1648 = vmatprep.subr.mxu0 0.0
    %1649 = vmatpush2.msra.mxu0 0.0
    %1650 = vmatprep.subr.mxu0 0.0
    %1651 = vmatpush2.msra.mxu0 0.0
    %1652 = vmatprep.subr.mxu0 0.0
    %1653 = vmatpush2.msra.mxu0 0.0
    %1654 = vmatprep.subr.mxu0 0.0
    %1655 = vmatpush2.msra.mxu0 0.0
    %1656 = vmatprep.mubr.f32.mxu0 0.0
    %1657 = vmatmul.mubr.f32.gmra.mxu0 %v1590
    %v1658 = vpop.f32.mrf.mxu0
    %v1659 = vadd.f32 %v1586, %v1658
    %v1660 = vpop.f32.mrf.mxu0
    %1661 = vdwg.mxu0
    %vm1662 = vcmp.gt.f32.partialorder %v1659, 0.0
    %v1663 = vmin.f32 %v1659, 0.0
    %v1664 = vmul.f32 %v1663, 1.442695
    %v1665 = vpow.pop %v1664
    %v1666 = vsub.f32 %v1665, 1.0
    %v1667 = vsel %vm1662, %v1659, %v1666
    %v1668 = vld [vmem:[%s5] sm:$0xff]
    %v1669 = vld [vmem:[%s5 + $0x8] sm:$0xff]
    %v1670 = vld [vmem:[%s6 + $0x8] sm:$0x1]
    %v1672 = vlaneseq
    %v1673 = vshrl.u32 %v1672, 7
    %v1674 = vsub.s32 0, %v1673
    %v1675 = vrot.slane %v1670, %v1674
    %v1678 = vsel %vm1497, %v1667, 0
    %1680 = vmatprep.subr.mxu0 0.0
    %1681 = vmatpush1.msra.mxu0 0.0
    %1682 = vmatprep.subr.mxu0 0.0
    %1683 = vmatpush1.msra.mxu0 0.0
    %1684 = vmatprep.subr.mxu0 0.0
    %1685 = vmatpush1.msra.mxu0 0.0
    %1686 = vmatprep.subr.mxu0 0.0
    %1687 = vmatpush1.msra.mxu0 0.0
    %1688 = vmatprep.subr.mxu0 0.0
    %1689 = vmatpush1.msra.mxu0 0.0
    %1690 = vmatprep.subr.mxu0 0.0
    %1691 = vmatpush1.msra.mxu0 0.0
    %1692 = vmatprep.subr.mxu0 0.0
    %1693 = vmatpush1.msra.mxu0 0.0
    %1694 = vmatprep.subr.mxu0 0.0
    %1695 = vmatpush1.msra.mxu0 0.0
    %1696 = vmatprep.subr.mxu0 0.0
    %1697 = vmatpush1.msra.mxu0 0.0
    %1698 = vmatprep.subr.mxu0 0.0
    %1699 = vmatpush1.msra.mxu0 0.0
    %1700 = vmatprep.subr.mxu0 0.0
    %1701 = vmatpush1.msra.mxu0 0.0
    %1702 = vmatprep.subr.mxu0 0.0
    %1703 = vmatpush1.msra.mxu0 0.0
    %1704 = vmatprep.subr.mxu0 0.0
    %1705 = vmatpush1.msra.mxu0 0.0
    %1706 = vmatprep.subr.mxu0 0.0
    %1707 = vmatpush1.msra.mxu0 0.0
    %1708 = vmatprep.subr.mxu0 0.0
    %1709 = vmatpush1.msra.mxu0 %v1669
    %1710 = vmatprep.subr.mxu0 0.0
    %1711 = vmatpush1.msra.mxu0 %v1668
    %1712 = vmatprep.subr.mxu0 0.0
    %1713 = vmatpush2.msra.mxu0 0.0
    %1714 = vmatprep.subr.mxu0 0.0
    %1715 = vmatpush2.msra.mxu0 0.0
    %1716 = vmatprep.subr.mxu0 0.0
    %1717 = vmatpush2.msra.mxu0 0.0
    %1718 = vmatprep.subr.mxu0 0.0
    %1719 = vmatpush2.msra.mxu0 0.0
    %1720 = vmatprep.subr.mxu0 0.0
    %1721 = vmatpush2.msra.mxu0 0.0
    %1722 = vmatprep.subr.mxu0 0.0
    %1723 = vmatpush2.msra.mxu0 0.0
    %1724 = vmatprep.subr.mxu0 0.0
    %1725 = vmatpush2.msra.mxu0 0.0
    %1726 = vmatprep.subr.mxu0 0.0
    %1727 = vmatpush2.msra.mxu0 0.0
    %1728 = vmatprep.subr.mxu0 0.0
    %1729 = vmatpush2.msra.mxu0 0.0
    %1730 = vmatprep.subr.mxu0 0.0
    %1731 = vmatpush2.msra.mxu0 0.0
    %1732 = vmatprep.subr.mxu0 0.0
    %1733 = vmatpush2.msra.mxu0 0.0
    %1734 = vmatprep.subr.mxu0 0.0
    %1735 = vmatpush2.msra.mxu0 0.0
    %1736 = vmatprep.subr.mxu0 0.0
    %1737 = vmatpush2.msra.mxu0 0.0
    %1738 = vmatprep.subr.mxu0 0.0
    %1739 = vmatpush2.msra.mxu0 0.0
    %1740 = vmatprep.subr.mxu0 0.0
    %1741 = vmatpush2.msra.mxu0 0.0
    %1742 = vmatprep.subr.mxu0 0.0
    %1743 = vmatpush2.msra.mxu0 0.0
    %1744 = vmatprep.mubr.f32.mxu0 0.0
    %1745 = vmatmul.mubr.f32.gmra.mxu0 %v1678
    %v1746 = vpop.f32.mrf.mxu0
    %v1747 = vadd.f32 %v1675, %v1746
    %v1748 = vpop.f32.mrf.mxu0
    %1749 = vdwg.mxu0
    %vm1750 = vcmask 1024
    %1751 = vst.msk [vmem:[%s8] sm:$0x3] %vm1750, %v1747
    %v1752 = vld [vmem:[%s7] sm:$0x3]
    %v1753 = vsub.f32 %v1752, %v1747
    %v1754 = vmul.f32 %v1753, %v1753
    %v1755 = vsel %vm1750, %v1754, 0.0
    %1756 = vadd.xlane.f32.xlu0 %v1755
    %v1757 = vpop.xlane.xlu0 %1756
    %v1758 = vrot.slane %v1757, 4
    %v1759 = vadd.f32 %v1757, %v1758
    %v1760 = vrot.slane %v1759, 2
    %v1761 = vadd.f32 %v1759, %v1760
    %v1762 = vrot.slane %v1761, 1
    %v1763 = vadd.f32 %v1761, %v1762
    %s1764 = vtos %v1763
    %v1765 = vrcp.pop 2.0
    %s1766 = vtos %v1765
    %s1767 = smul.f32 %s1764, %s1766
    %v1768 = vstv %s1767
    %vm1769 = vcmask 0
    %1770 = vst.msk [vmem:[#allocation2] sm:$0x1] %vm1769, %v1768
    // Predicated region
    $region34: #{pilotnet_forward.1} parent=1 // pred_check
      _
    $region35: #{pilotnet_forward.1} parent=1 // pred_check_branch
      %1772 = sbr.rel (0) target = $region37
    $region36: #{pilotnet_forward.1} parent=1 // pred_region
      _
    $region37: #{pilotnet_forward.1} parent=1 // pred_fallthru
      _
    // Predicated region
    $region38: #{pilotnet_forward.1} parent=1 // pred_check
      _
    $region39: #{pilotnet_forward.1} parent=1 // pred_check_branch
      %1774 = sbr.rel (0) target = $region41
    $region40: #{pilotnet_forward.1} parent=1 // pred_region
      %s1776 = ssub.s32 16, 16
      %1777 = vsyncadd [#allocation3], %s1776
      %s1779 = sshll.u32 [#allocation2], 4
      %s1780 = int_to_ptr.vmem [resolvable:$true] %s1779
      %1782 = dma.vmem_to_hbm [thread:$0]  %s1780, 16, %s9, [#allocation3]
    $region41: #{pilotnet_forward.1} parent=1 // pred_fallthru
      _
    // Predicated region
    $region42: #{pilotnet_forward.1} parent=1 // pred_check
      _
    $region43: #{pilotnet_forward.1} parent=1 // pred_check_branch
      %1784 = sbr.rel (0) target = $region45
    $region44: #{pilotnet_forward.1} parent=1 // pred_region
      _
    $region45: #{pilotnet_forward.1} parent=1 // pred_fallthru
      _
    // Predicated region
    $region46: #{pilotnet_forward.1} parent=1 // pred_check
      _
    $region47: #{pilotnet_forward.1} parent=1 // pred_check_branch
      %1786 = sbr.rel (0) target = $region49
    $region48: #{pilotnet_forward.1} parent=1 // pred_region
      %1787 = dma.done [#allocation3], 16
    $region49: #{pilotnet_forward.1} parent=1 // pred_fallthru
      _
    %1788 = vsyncpa [#allocation3], 1

</llo_original>
